<compile_context>
chip_gen: v7x
topology: tpu7x:2x2x1
jax: 0.10.0
libtpu: 0.0.40
codegen_flags: <defaults>
</compile_context>

<pallas_src>
import functools

import jax
import jax.numpy as jnp
from jax import lax
from jax.experimental import pallas as pl
from jax.experimental.pallas import tpu as pltpu

# Fixed (non-trainable) conv weights from GaussLoss.__init__ (used by the reference).
GAUSS_W = [[1.0 / 16.0, 2.0 / 16.0, 1.0 / 16.0],
           [2.0 / 16.0, 4.0 / 16.0, 2.0 / 16.0],
           [1.0 / 16.0, 2.0 / 16.0, 1.0 / 16.0]]
LAPLACE_W = [[0.0, -1.0, 0.0],
             [-1.0, 4.0, -1.0],
             [0.0, -1.0, 0.0]]


def _shift_cols(v, dc):
    """y[:, j] = v[:, j + dc] with zero fill at the image's W border (|dc| == 1)."""
    rows = v.shape[0]
    z = jnp.zeros((rows, 1), v.dtype)
    if dc == 1:
        return jnp.concatenate([v[:, 1:], z], axis=1)
    return jnp.concatenate([z, v[:, :-1]], axis=1)


def _gauss_rows(v):
    """Horizontal [1, 2, 1] pass (un-normalised, zero-padded in W)."""
    return _shift_cols(v, -1) + 2.0 * v + _shift_cols(v, 1)


def _laplace(center, up, down):
    """4*c - up - down - left - right (left/right zero-filled at the W border)."""
    return (4.0 * center - up - down
            - _shift_cols(center, -1) - _shift_cols(center, 1))


def _gauss_loss_kernel(x_ref, xh_ref, t_ref, th_ref, out_ref, acc_ref, *, tile_h):
    # x_ref : (3, tile_h, W)  input row tile
    # xh_ref: (3, 2, W)       input halo [row above tile, row below tile] (0 at image edge)
    # t_ref : (3, tile_h, W)  target row tile
    # th_ref: (3, 4, W)       target halo [2 rows above, 2 rows below]    (0 at image edge)
    tk = pl.program_id(1)
    num_t = pl.num_programs(1)

    @pl.when(tk == 0)
    def _():
        acc_ref[...] = jnp.zeros_like(acc_ref)

    # Rows of gauss(target) that fall outside the image must contribute zero to
    # the following laplace (its padding=1 is zero padding).  Fold that row mask
    # into the 1/16 gauss normalisation so interior work stays unchanged; only
    # the first/last row tiles actually zero a row.
    e = lax.broadcasted_iota(jnp.int32, (tile_h + 2, 1), 0)
    lo = jnp.where(tk > 0, -1, 0)
    hi = jnp.where(tk < num_t - 1, tile_h + 2, tile_h + 1)
    g_scale = jnp.where((e > lo) & (e < hi), 1.0 / 16.0, 0.0)   # (tile_h+2, 1)

    dd = None
    for c in range(3):
        x = x_ref[c]              # (tile_h, W)
        xh = xh_ref[c]            # (2, W)
        t = t_ref[c]              # (tile_h, W)
        thl = th_ref[c]           # (4, W)

        # --- laplace(input_c), padding=1 ------------------------------------
        x_up = jnp.concatenate([xh[0:1], x[:-1]], axis=0)
        x_dn = jnp.concatenate([x[1:], xh[1:2]], axis=0)
        a = _laplace(x, x_up, x_dn)

        # --- gauss(target_c): separable, on rows [-1, tile_h+1) of this tile -
        gh_c = _gauss_rows(t)
        gh_t = _gauss_rows(thl[0:2])
        gh_b = _gauss_rows(thl[2:4])
        g_up = jnp.concatenate([gh_t, gh_c], axis=0)                   # rows r-2 .. r+th-1
        g_md = jnp.concatenate([gh_t[1:2], gh_c, gh_b[0:1]], axis=0)   # rows r-1 .. r+th
        g_dn = jnp.concatenate([gh_c, gh_b], axis=0)                   # rows r   .. r+th+1
        g_ext = (g_up + 2.0 * g_md + g_dn) * g_scale                   # (tile_h+2, W)

        # --- laplace(gauss(target_c)), padding=1 ------------------------------
        b = _laplace(g_ext[1:-1], g_ext[:-2], g_ext[2:])

        d = a - b
        dd = d * d if dd is None else dd + d * d

    acc_ref[...] += dd            # elementwise accumulate (no per-step XLU reduce)

    @pl.when(tk == num_t - 1)
    def _():
        total = jnp.sum(acc_ref[...], axis=(0, 1), keepdims=True)      # (1, 1)
        out_ref[...] = jnp.broadcast_to(total, out_ref.shape)          # lane-dense (8,128)


def _pick_tile_h(H, W):
    """Largest multiple-of-8 divisor of H keeping a (tile_h, W) f32 plane ~<=768KiB."""
    if H % 8 != 0:
        return H          # TODO(synk): odd H falls back to a single full-plane tile.
    plane_budget = 3 << 18
    cap = max(8, min(H, (plane_budget // (4 * W)) // 8 * 8))
    if H <= cap:
        return H
    for d in range(cap, 7, -8):
        if H % d == 0:
            return d
    return H


def _build_halos(x, t, tile_h):
    """Per-row-tile vertical halos, zero-filled at the image top/bottom.

    x halo: (N, 3, K, 2, W) -> [row above tile, row below tile]
    t halo: (N, 3, K, 4, W) -> [2 rows above tile, 2 rows below tile]
    Only a few rows per tile are gathered; no full-tensor pad/copy.
    """
    N, C, H, W = x.shape
    K = H // tile_h
    if K == 1:
        return (jnp.zeros((N, C, 1, 2, W), jnp.float32),
                jnp.zeros((N, C, 1, 4, W), jnp.float32))
    xr = x.reshape(N, C, K, tile_h, W)
    tr = t.reshape(N, C, K, tile_h, W)
    z1 = jnp.zeros((N, C, 1, 1, W), jnp.float32)
    z2 = jnp.zeros((N, C, 1, 2, W), jnp.float32)
    x_top = jnp.concatenate([z1, xr[:, :, :-1, -1:, :]], axis=2)
    x_bot = jnp.concatenate([xr[:, :, 1:, :1, :], z1], axis=2)
    t_top = jnp.concatenate([z2, tr[:, :, :-1, -2:, :]], axis=2)
    t_bot = jnp.concatenate([tr[:, :, 1:, :2, :], z2], axis=2)
    return (jnp.concatenate([x_top, x_bot], axis=3),
            jnp.concatenate([t_top, t_bot], axis=3))


def gauss_loss(inputs, targets, *, tile_h=None):
    """inputs, targets: (N, 3, H, W) NCHW. Returns scalar f32 loss."""
    N, C, H, W = inputs.shape
    assert C == 3, "GaussLoss uses exactly 3 single-channel slices along dim=1"
    x = inputs.astype(jnp.float32)
    t = targets.astype(jnp.float32)

    if tile_h is None:
        tile_h = _pick_tile_h(H, W)
    assert H % tile_h == 0, "tile_h must divide H"
    K = H // tile_h

    x_halo, t_halo = _build_halos(x, t, tile_h)

    kernel = functools.partial(_gauss_loss_kernel, tile_h=tile_h)

    plane_bytes = tile_h * W * 4
    vmem_limit = int(min(64 * 2**20, max(32 * 2**20, 32 * plane_bytes + (4 << 20))))

    partials = pl.pallas_call(
        kernel,
        out_shape=jax.ShapeDtypeStruct((N, 8, 128), jnp.float32),
        grid_spec=pltpu.PrefetchScalarGridSpec(
            num_scalar_prefetch=0,
            grid=(N, K),
            in_specs=[
                pl.BlockSpec((None, 3, tile_h, W), lambda n, k: (n, 0, k, 0)),
                pl.BlockSpec((None, 3, None, 2, W), lambda n, k: (n, 0, k, 0, 0)),
                pl.BlockSpec((None, 3, tile_h, W), lambda n, k: (n, 0, k, 0)),
                pl.BlockSpec((None, 3, None, 4, W), lambda n, k: (n, 0, k, 0, 0)),
            ],
            out_specs=pl.BlockSpec((None, 8, 128), lambda n, k: (n, 0, 0)),
            scratch_shapes=[pltpu.VMEM((tile_h, W), jnp.float32)],
        ),
        compiler_params=pltpu.CompilerParams(
            dimension_semantics=("parallel", "arbitrary"),
            vmem_limit_bytes=vmem_limit),
    )(x, x_halo, t, t_halo)

    # Each (8,128) slab holds the per-n total replicated.
    # sum_c MSE_c == (grand sum of squared diffs) / (N*H*W).
    return jnp.sum(partials[:, 0, 0]) / jnp.float32(N * H * W)


# ----------------------------- pure-JAX reference -----------------------------
def _conv3x3_same(x2d, w):
    H, W = x2d.shape
    xp = jnp.pad(x2d, ((1, 1), (1, 1)))
    out = jnp.zeros((H, W), jnp.float32)
    for di in range(3):
        for dj in range(3):
            if w[di][dj] != 0.0:
                out = out + w[di][dj] * xp[di:di + H, dj:dj + W]
    return out


def _reference_loss(inputs, targets):
    N, C, H, W = inputs.shape
    total = 0.0
    for c in range(3):
        acc = 0.0
        for n in range(N):
            a = _conv3x3_same(inputs[n, c].astype(jnp.float32), LAPLACE_W)
            b = _conv3x3_same(
                _conv3x3_same(targets[n, c].astype(jnp.float32), GAUSS_W), LAPLACE_W)
            acc = acc + jnp.sum((a - b) ** 2)
        total = total + acc / (N * H * W)
    return total


if __name__ == "__main__":
    key = jax.random.PRNGKey(0)
    k1, k2, k3, k4 = jax.random.split(key, 4)

    # Primary small case (matches the module: NCHW with 3 color channels).
    N, C, H, W = 2, 3, 16, 16
    x = jax.random.uniform(k1, (N, C, H, W), dtype=jnp.float32)
    t = jax.random.uniform(k2, (N, C, H, W), dtype=jnp.float32)
    loss = jax.block_until_ready(jax.jit(gauss_loss)(x, t))
    ref = _reference_loss(x, t)
    assert jnp.allclose(loss, ref, rtol=1e-4, atol=1e-5), (loss, ref)

    # Secondary check exercising the multi-row-tile (halo) path.
    x2 = jax.random.uniform(k3, (2, 3, 32, 128), dtype=jnp.float32)
    t2 = jax.random.uniform(k4, (2, 3, 32, 128), dtype=jnp.float32)
    loss2 = jax.block_until_ready(
        jax.jit(functools.partial(gauss_loss, tile_h=8))(x2, t2))
    ref2 = _reference_loss(x2, t2)
    assert jnp.allclose(loss2, ref2, rtol=1e-4, atol=1e-5), (loss2, ref2)

    print("KERNEL_OK")
</pallas_src>

<mosaic_0001>
module attributes {stable_mosaic.version = 11 : i64} {
  func.func @_gauss_loss_kernel(%arg0: i32, %arg1: i32, %arg2: memref<1x3x16x16xf32, #tpu.memory_space<vmem>>, %arg3: memref<1x3x1x2x16xf32, #tpu.memory_space<vmem>>, %arg4: memref<1x3x16x16xf32, #tpu.memory_space<vmem>>, %arg5: memref<1x3x1x4x16xf32, #tpu.memory_space<vmem>>, %arg6: memref<1x8x128xf32, #tpu.memory_space<vmem>>, %arg7: memref<16x16xf32, #tpu.memory_space<vmem>>) attributes {dimension_semantics = [#tpu.dimension_semantics<parallel>, #tpu.dimension_semantics<arbitrary>], iteration_bounds = array<i64: 2, 1>, scalar_prefetch = 0 : i64, scratch_operands = 1 : i64, tpu.core_type = #tpu.core_type<tc>, window_params = [{transform_indices = @transform_0, window_bounds = array<i64: 1, 3, 16, 16>}, {transform_indices = @transform_1, window_bounds = array<i64: 1, 3, 1, 2, 16>}, {transform_indices = @transform_2, window_bounds = array<i64: 1, 3, 16, 16>}, {transform_indices = @transform_3, window_bounds = array<i64: 1, 3, 1, 4, 16>}, {transform_indices = @transform_4, window_bounds = array<i64: 1, 8, 128>}]} {
    %c0_i32 = arith.constant 0 : i32
    %0 = arith.cmpi eq, %arg1, %c0_i32 : i32
    %1 = arith.extui %0 : i1 to i32
    %c0_i32_0 = arith.constant 0 : i32
    %2 = arith.cmpi ne, %1, %c0_i32_0 : i32
    scf.if %2 {
      %cst_110 = arith.constant 0.000000e+00 : f32
      %282 = vector.broadcast %cst_110 : f32 to vector<16x16xf32>
      %c0_111 = arith.constant 0 : index
      %c0_112 = arith.constant 0 : index
      %283 = vector.load %arg7[%c0_111, %c0_112] : memref<16x16xf32, #tpu.memory_space<vmem>>, vector<16x16xf32>
      tpu.vector_store %arg7[%c0_111, %c0_112], %282 {strides = array<i32>} : memref<16x16xf32, #tpu.memory_space<vmem>>, vector<16x16xf32>,
    } else {
    }
    %3 = tpu.iota {dimensions = array<i32: 0>} : vector<18x1xi32>
    %c0_i32_1 = arith.constant 0 : i32
    %4 = arith.cmpi sgt, %arg1, %c0_i32_1 : i32
    %c-1_i32 = arith.constant -1 : i32
    %c0_i32_2 = arith.constant 0 : i32
    %5 = arith.select %4, %c-1_i32, %c0_i32_2 : i32
    %c0_i32_3 = arith.constant 0 : i32
    %6 = arith.cmpi slt, %arg1, %c0_i32_3 : i32
    %c18_i32 = arith.constant 18 : i32
    %c17_i32 = arith.constant 17 : i32
    %7 = arith.select %6, %c18_i32, %c17_i32 : i32
    %8 = vector.broadcast %5 : i32 to vector<18x1xi32>
    %9 = arith.cmpi sgt, %3, %8 : vector<18x1xi32>
    %10 = vector.broadcast %7 : i32 to vector<18x1xi32>
    %11 = arith.cmpi slt, %3, %10 : vector<18x1xi32>
    %12 = arith.andi %9, %11 : vector<18x1xi1>
    %cst = arith.constant 6.250000e-02 : f32
    %cst_4 = arith.constant 0.000000e+00 : f32
    %13 = vector.broadcast %cst : f32 to vector<18x1xf32>
    %14 = vector.broadcast %cst_4 : f32 to vector<18x1xf32>
    %15 = arith.select %12, %13, %14 : vector<18x1xi1>, vector<18x1xf32>
    %c0 = arith.constant 0 : index
    %c0_5 = arith.constant 0 : index
    %c0_6 = arith.constant 0 : index
    %c0_7 = arith.constant 0 : index
    %16 = vector.load %arg2[%c0, %c0_5, %c0_6, %c0_7] : memref<1x3x16x16xf32, #tpu.memory_space<vmem>>, vector<1x1x16x16xf32>
    %17 = vector.shape_cast %16 : vector<1x1x16x16xf32> to vector<16x16xf32>
    %c0_8 = arith.constant 0 : index
    %c0_9 = arith.constant 0 : index
    %c0_10 = arith.constant 0 : index
    %c0_11 = arith.constant 0 : index
    %c0_12 = arith.constant 0 : index
    %18 = vector.load %arg3[%c0_8, %c0_9, %c0_10, %c0_11, %c0_12] : memref<1x3x1x2x16xf32, #tpu.memory_space<vmem>>, vector<1x1x1x2x16xf32>
    %19 = vector.shape_cast %18 : vector<1x1x1x2x16xf32> to vector<2x16xf32>
    %c0_13 = arith.constant 0 : index
    %c0_14 = arith.constant 0 : index
    %c0_15 = arith.constant 0 : index
    %c0_16 = arith.constant 0 : index
    %20 = vector.load %arg4[%c0_13, %c0_14, %c0_15, %c0_16] : memref<1x3x16x16xf32, #tpu.memory_space<vmem>>, vector<1x1x16x16xf32>
    %21 = vector.shape_cast %20 : vector<1x1x16x16xf32> to vector<16x16xf32>
    %c0_17 = arith.constant 0 : index
    %c0_18 = arith.constant 0 : index
    %c0_19 = arith.constant 0 : index
    %c0_20 = arith.constant 0 : index
    %c0_21 = arith.constant 0 : index
    %22 = vector.load %arg5[%c0_17, %c0_18, %c0_19, %c0_20, %c0_21] : memref<1x3x1x4x16xf32, #tpu.memory_space<vmem>>, vector<1x1x1x4x16xf32>
    %23 = vector.shape_cast %22 : vector<1x1x1x4x16xf32> to vector<4x16xf32>
    %24 = vector.extract_strided_slice %19 {offsets = [0, 0], sizes = [1, 16], strides = [1, 1]} : vector<2x16xf32> to vector<1x16xf32>
    %25 = vector.extract_strided_slice %17 {offsets = [0, 0], sizes = [15, 16], strides = [1, 1]} : vector<16x16xf32> to vector<15x16xf32>
    %26 = tpu.concatenate %24, %25 in 0 : vector<1x16xf32>, vector<15x16xf32> -> vector<16x16xf32>
    %27 = vector.extract_strided_slice %17 {offsets = [1, 0], sizes = [15, 16], strides = [1, 1]} : vector<16x16xf32> to vector<15x16xf32>
    %28 = vector.extract_strided_slice %19 {offsets = [1, 0], sizes = [1, 16], strides = [1, 1]} : vector<2x16xf32> to vector<1x16xf32>
    %29 = tpu.concatenate %27, %28 in 0 : vector<15x16xf32>, vector<1x16xf32> -> vector<16x16xf32>
    %cst_22 = arith.constant 4.000000e+00 : f32
    %30 = vector.broadcast %cst_22 : f32 to vector<16x16xf32>
    %31 = arith.mulf %30, %17 : vector<16x16xf32>
    %32 = arith.subf %31, %26 : vector<16x16xf32>
    %33 = arith.subf %32, %29 : vector<16x16xf32>
    %cst_23 = arith.constant 0.000000e+00 : f32
    %34 = vector.broadcast %cst_23 : f32 to vector<16x1xf32>
    %35 = vector.extract_strided_slice %17 {offsets = [0, 0], sizes = [16, 15], strides = [1, 1]} : vector<16x16xf32> to vector<16x15xf32>
    %36 = tpu.concatenate %34, %35 in 1 : vector<16x1xf32>, vector<16x15xf32> -> vector<16x16xf32>
    %37 = arith.subf %33, %36 : vector<16x16xf32>
    %cst_24 = arith.constant 0.000000e+00 : f32
    %38 = vector.broadcast %cst_24 : f32 to vector<16x1xf32>
    %39 = vector.extract_strided_slice %17 {offsets = [0, 1], sizes = [16, 15], strides = [1, 1]} : vector<16x16xf32> to vector<16x15xf32>
    %40 = tpu.concatenate %39, %38 in 1 : vector<16x15xf32>, vector<16x1xf32> -> vector<16x16xf32>
    %41 = arith.subf %37, %40 : vector<16x16xf32>
    %cst_25 = arith.constant 0.000000e+00 : f32
    %42 = vector.broadcast %cst_25 : f32 to vector<16x1xf32>
    %43 = vector.extract_strided_slice %21 {offsets = [0, 0], sizes = [16, 15], strides = [1, 1]} : vector<16x16xf32> to vector<16x15xf32>
    %44 = tpu.concatenate %42, %43 in 1 : vector<16x1xf32>, vector<16x15xf32> -> vector<16x16xf32>
    %cst_26 = arith.constant 2.000000e+00 : f32
    %45 = vector.broadcast %cst_26 : f32 to vector<16x16xf32>
    %46 = arith.mulf %45, %21 : vector<16x16xf32>
    %47 = arith.addf %44, %46 : vector<16x16xf32>
    %cst_27 = arith.constant 0.000000e+00 : f32
    %48 = vector.broadcast %cst_27 : f32 to vector<16x1xf32>
    %49 = vector.extract_strided_slice %21 {offsets = [0, 1], sizes = [16, 15], strides = [1, 1]} : vector<16x16xf32> to vector<16x15xf32>
    %50 = tpu.concatenate %49, %48 in 1 : vector<16x15xf32>, vector<16x1xf32> -> vector<16x16xf32>
    %51 = arith.addf %47, %50 : vector<16x16xf32>
    %52 = vector.extract_strided_slice %23 {offsets = [0, 0], sizes = [2, 16], strides = [1, 1]} : vector<4x16xf32> to vector<2x16xf32>
    %cst_28 = arith.constant 0.000000e+00 : f32
    %53 = vector.broadcast %cst_28 : f32 to vector<2x1xf32>
    %54 = vector.extract_strided_slice %52 {offsets = [0, 0], sizes = [2, 15], strides = [1, 1]} : vector<2x16xf32> to vector<2x15xf32>
    %55 = tpu.concatenate %53, %54 in 1 : vector<2x1xf32>, vector<2x15xf32> -> vector<2x16xf32>
    %cst_29 = arith.constant 2.000000e+00 : f32
    %56 = vector.broadcast %cst_29 : f32 to vector<2x16xf32>
    %57 = arith.mulf %56, %52 : vector<2x16xf32>
    %58 = arith.addf %55, %57 : vector<2x16xf32>
    %cst_30 = arith.constant 0.000000e+00 : f32
    %59 = vector.broadcast %cst_30 : f32 to vector<2x1xf32>
    %60 = vector.extract_strided_slice %52 {offsets = [0, 1], sizes = [2, 15], strides = [1, 1]} : vector<2x16xf32> to vector<2x15xf32>
    %61 = tpu.concatenate %60, %59 in 1 : vector<2x15xf32>, vector<2x1xf32> -> vector<2x16xf32>
    %62 = arith.addf %58, %61 : vector<2x16xf32>
    %63 = vector.extract_strided_slice %23 {offsets = [2, 0], sizes = [2, 16], strides = [1, 1]} : vector<4x16xf32> to vector<2x16xf32>
    %cst_31 = arith.constant 0.000000e+00 : f32
    %64 = vector.broadcast %cst_31 : f32 to vector<2x1xf32>
    %65 = vector.extract_strided_slice %63 {offsets = [0, 0], sizes = [2, 15], strides = [1, 1]} : vector<2x16xf32> to vector<2x15xf32>
    %66 = tpu.concatenate %64, %65 in 1 : vector<2x1xf32>, vector<2x15xf32> -> vector<2x16xf32>
    %cst_32 = arith.constant 2.000000e+00 : f32
    %67 = vector.broadcast %cst_32 : f32 to vector<2x16xf32>
    %68 = arith.mulf %67, %63 : vector<2x16xf32>
    %69 = arith.addf %66, %68 : vector<2x16xf32>
    %cst_33 = arith.constant 0.000000e+00 : f32
    %70 = vector.broadcast %cst_33 : f32 to vector<2x1xf32>
    %71 = vector.extract_strided_slice %63 {offsets = [0, 1], sizes = [2, 15], strides = [1, 1]} : vector<2x16xf32> to vector<2x15xf32>
    %72 = tpu.concatenate %71, %70 in 1 : vector<2x15xf32>, vector<2x1xf32> -> vector<2x16xf32>
    %73 = arith.addf %69, %72 : vector<2x16xf32>
    %74 = tpu.concatenate %62, %51 in 0 : vector<2x16xf32>, vector<16x16xf32> -> vector<18x16xf32>
    %75 = vector.extract_strided_slice %62 {offsets = [1, 0], sizes = [1, 16], strides = [1, 1]} : vector<2x16xf32> to vector<1x16xf32>
    %76 = vector.extract_strided_slice %73 {offsets = [0, 0], sizes = [1, 16], strides = [1, 1]} : vector<2x16xf32> to vector<1x16xf32>
    %77 = tpu.concatenate %75, %51, %76 in 0 : vector<1x16xf32>, vector<16x16xf32>, vector<1x16xf32> -> vector<18x16xf32>
    %78 = tpu.concatenate %51, %73 in 0 : vector<16x16xf32>, vector<2x16xf32> -> vector<18x16xf32>
    %cst_34 = arith.constant 2.000000e+00 : f32
    %79 = vector.broadcast %cst_34 : f32 to vector<18x16xf32>
    %80 = arith.mulf %79, %77 : vector<18x16xf32>
    %81 = arith.addf %74, %80 : vector<18x16xf32>
    %82 = arith.addf %81, %78 : vector<18x16xf32>
    %83 = vector.broadcast %15 : vector<18x1xf32> to vector<18x16xf32>
    %84 = arith.mulf %82, %83 : vector<18x16xf32>
    %85 = vector.extract_strided_slice %84 {offsets = [1, 0], sizes = [16, 16], strides = [1, 1]} : vector<18x16xf32> to vector<16x16xf32>
    %86 = vector.extract_strided_slice %84 {offsets = [0, 0], sizes = [16, 16], strides = [1, 1]} : vector<18x16xf32> to vector<16x16xf32>
    %87 = vector.extract_strided_slice %84 {offsets = [2, 0], sizes = [16, 16], strides = [1, 1]} : vector<18x16xf32> to vector<16x16xf32>
    %cst_35 = arith.constant 4.000000e+00 : f32
    %88 = vector.broadcast %cst_35 : f32 to vector<16x16xf32>
    %89 = arith.mulf %88, %85 : vector<16x16xf32>
    %90 = arith.subf %89, %86 : vector<16x16xf32>
    %91 = arith.subf %90, %87 : vector<16x16xf32>
    %cst_36 = arith.constant 0.000000e+00 : f32
    %92 = vector.broadcast %cst_36 : f32 to vector<16x1xf32>
    %93 = vector.extract_strided_slice %85 {offsets = [0, 0], sizes = [16, 15], strides = [1, 1]} : vector<16x16xf32> to vector<16x15xf32>
    %94 = tpu.concatenate %92, %93 in 1 : vector<16x1xf32>, vector<16x15xf32> -> vector<16x16xf32>
    %95 = arith.subf %91, %94 : vector<16x16xf32>
    %cst_37 = arith.constant 0.000000e+00 : f32
    %96 = vector.broadcast %cst_37 : f32 to vector<16x1xf32>
    %97 = vector.extract_strided_slice %85 {offsets = [0, 1], sizes = [16, 15], strides = [1, 1]} : vector<16x16xf32> to vector<16x15xf32>
    %98 = tpu.concatenate %97, %96 in 1 : vector<16x15xf32>, vector<16x1xf32> -> vector<16x16xf32>
    %99 = arith.subf %95, %98 : vector<16x16xf32>
    %100 = arith.subf %41, %99 : vector<16x16xf32>
    %101 = arith.mulf %100, %100 : vector<16x16xf32>
    %c0_38 = arith.constant 0 : index
    %c1 = arith.constant 1 : index
    %c0_39 = arith.constant 0 : index
    %c0_40 = arith.constant 0 : index
    %102 = vector.load %arg2[%c0_38, %c1, %c0_39, %c0_40] : memref<1x3x16x16xf32, #tpu.memory_space<vmem>>, vector<1x1x16x16xf32>
    %103 = vector.shape_cast %102 : vector<1x1x16x16xf32> to vector<16x16xf32>
    %c0_41 = arith.constant 0 : index
    %c1_42 = arith.constant 1 : index
    %c0_43 = arith.constant 0 : index
    %c0_44 = arith.constant 0 : index
    %c0_45 = arith.constant 0 : index
    %104 = vector.load %arg3[%c0_41, %c1_42, %c0_43, %c0_44, %c0_45] : memref<1x3x1x2x16xf32, #tpu.memory_space<vmem>>, vector<1x1x1x2x16xf32>
    %105 = vector.shape_cast %104 : vector<1x1x1x2x16xf32> to vector<2x16xf32>
    %c0_46 = arith.constant 0 : index
    %c1_47 = arith.constant 1 : index
    %c0_48 = arith.constant 0 : index
    %c0_49 = arith.constant 0 : index
    %106 = vector.load %arg4[%c0_46, %c1_47, %c0_48, %c0_49] : memref<1x3x16x16xf32, #tpu.memory_space<vmem>>, vector<1x1x16x16xf32>
    %107 = vector.shape_cast %106 : vector<1x1x16x16xf32> to vector<16x16xf32>
    %c0_50 = arith.constant 0 : index
    %c1_51 = arith.constant 1 : index
    %c0_52 = arith.constant 0 : index
    %c0_53 = arith.constant 0 : index
    %c0_54 = arith.constant 0 : index
    %108 = vector.load %arg5[%c0_50, %c1_51, %c0_52, %c0_53, %c0_54] : memref<1x3x1x4x16xf32, #tpu.memory_space<vmem>>, vector<1x1x1x4x16xf32>
    %109 = vector.shape_cast %108 : vector<1x1x1x4x16xf32> to vector<4x16xf32>
    %110 = vector.extract_strided_slice %105 {offsets = [0, 0], sizes = [1, 16], strides = [1, 1]} : vector<2x16xf32> to vector<1x16xf32>
    %111 = vector.extract_strided_slice %103 {offsets = [0, 0], sizes = [15, 16], strides = [1, 1]} : vector<16x16xf32> to vector<15x16xf32>
    %112 = tpu.concatenate %110, %111 in 0 : vector<1x16xf32>, vector<15x16xf32> -> vector<16x16xf32>
    %113 = vector.extract_strided_slice %103 {offsets = [1, 0], sizes = [15, 16], strides = [1, 1]} : vector<16x16xf32> to vector<15x16xf32>
    %114 = vector.extract_strided_slice %105 {offsets = [1, 0], sizes = [1, 16], strides = [1, 1]} : vector<2x16xf32> to vector<1x16xf32>
    %115 = tpu.concatenate %113, %114 in 0 : vector<15x16xf32>, vector<1x16xf32> -> vector<16x16xf32>
    %cst_55 = arith.constant 4.000000e+00 : f32
    %116 = vector.broadcast %cst_55 : f32 to vector<16x16xf32>
    %117 = arith.mulf %116, %103 : vector<16x16xf32>
    %118 = arith.subf %117, %112 : vector<16x16xf32>
    %119 = arith.subf %118, %115 : vector<16x16xf32>
    %cst_56 = arith.constant 0.000000e+00 : f32
    %120 = vector.broadcast %cst_56 : f32 to vector<16x1xf32>
    %121 = vector.extract_strided_slice %103 {offsets = [0, 0], sizes = [16, 15], strides = [1, 1]} : vector<16x16xf32> to vector<16x15xf32>
    %122 = tpu.concatenate %120, %121 in 1 : vector<16x1xf32>, vector<16x15xf32> -> vector<16x16xf32>
    %123 = arith.subf %119, %122 : vector<16x16xf32>
    %cst_57 = arith.constant 0.000000e+00 : f32
    %124 = vector.broadcast %cst_57 : f32 to vector<16x1xf32>
    %125 = vector.extract_strided_slice %103 {offsets = [0, 1], sizes = [16, 15], strides = [1, 1]} : vector<16x16xf32> to vector<16x15xf32>
    %126 = tpu.concatenate %125, %124 in 1 : vector<16x15xf32>, vector<16x1xf32> -> vector<16x16xf32>
    %127 = arith.subf %123, %126 : vector<16x16xf32>
    %cst_58 = arith.constant 0.000000e+00 : f32
    %128 = vector.broadcast %cst_58 : f32 to vector<16x1xf32>
    %129 = vector.extract_strided_slice %107 {offsets = [0, 0], sizes = [16, 15], strides = [1, 1]} : vector<16x16xf32> to vector<16x15xf32>
    %130 = tpu.concatenate %128, %129 in 1 : vector<16x1xf32>, vector<16x15xf32> -> vector<16x16xf32>
    %cst_59 = arith.constant 2.000000e+00 : f32
    %131 = vector.broadcast %cst_59 : f32 to vector<16x16xf32>
    %132 = arith.mulf %131, %107 : vector<16x16xf32>
    %133 = arith.addf %130, %132 : vector<16x16xf32>
    %cst_60 = arith.constant 0.000000e+00 : f32
    %134 = vector.broadcast %cst_60 : f32 to vector<16x1xf32>
    %135 = vector.extract_strided_slice %107 {offsets = [0, 1], sizes = [16, 15], strides = [1, 1]} : vector<16x16xf32> to vector<16x15xf32>
    %136 = tpu.concatenate %135, %134 in 1 : vector<16x15xf32>, vector<16x1xf32> -> vector<16x16xf32>
    %137 = arith.addf %133, %136 : vector<16x16xf32>
    %138 = vector.extract_strided_slice %109 {offsets = [0, 0], sizes = [2, 16], strides = [1, 1]} : vector<4x16xf32> to vector<2x16xf32>
    %cst_61 = arith.constant 0.000000e+00 : f32
    %139 = vector.broadcast %cst_61 : f32 to vector<2x1xf32>
    %140 = vector.extract_strided_slice %138 {offsets = [0, 0], sizes = [2, 15], strides = [1, 1]} : vector<2x16xf32> to vector<2x15xf32>
    %141 = tpu.concatenate %139, %140 in 1 : vector<2x1xf32>, vector<2x15xf32> -> vector<2x16xf32>
    %cst_62 = arith.constant 2.000000e+00 : f32
    %142 = vector.broadcast %cst_62 : f32 to vector<2x16xf32>
    %143 = arith.mulf %142, %138 : vector<2x16xf32>
    %144 = arith.addf %141, %143 : vector<2x16xf32>
    %cst_63 = arith.constant 0.000000e+00 : f32
    %145 = vector.broadcast %cst_63 : f32 to vector<2x1xf32>
    %146 = vector.extract_strided_slice %138 {offsets = [0, 1], sizes = [2, 15], strides = [1, 1]} : vector<2x16xf32> to vector<2x15xf32>
    %147 = tpu.concatenate %146, %145 in 1 : vector<2x15xf32>, vector<2x1xf32> -> vector<2x16xf32>
    %148 = arith.addf %144, %147 : vector<2x16xf32>
    %149 = vector.extract_strided_slice %109 {offsets = [2, 0], sizes = [2, 16], strides = [1, 1]} : vector<4x16xf32> to vector<2x16xf32>
    %cst_64 = arith.constant 0.000000e+00 : f32
    %150 = vector.broadcast %cst_64 : f32 to vector<2x1xf32>
    %151 = vector.extract_strided_slice %149 {offsets = [0, 0], sizes = [2, 15], strides = [1, 1]} : vector<2x16xf32> to vector<2x15xf32>
    %152 = tpu.concatenate %150, %151 in 1 : vector<2x1xf32>, vector<2x15xf32> -> vector<2x16xf32>
    %cst_65 = arith.constant 2.000000e+00 : f32
    %153 = vector.broadcast %cst_65 : f32 to vector<2x16xf32>
    %154 = arith.mulf %153, %149 : vector<2x16xf32>
    %155 = arith.addf %152, %154 : vector<2x16xf32>
    %cst_66 = arith.constant 0.000000e+00 : f32
    %156 = vector.broadcast %cst_66 : f32 to vector<2x1xf32>
    %157 = vector.extract_strided_slice %149 {offsets = [0, 1], sizes = [2, 15], strides = [1, 1]} : vector<2x16xf32> to vector<2x15xf32>
    %158 = tpu.concatenate %157, %156 in 1 : vector<2x15xf32>, vector<2x1xf32> -> vector<2x16xf32>
    %159 = arith.addf %155, %158 : vector<2x16xf32>
    %160 = tpu.concatenate %148, %137 in 0 : vector<2x16xf32>, vector<16x16xf32> -> vector<18x16xf32>
    %161 = vector.extract_strided_slice %148 {offsets = [1, 0], sizes = [1, 16], strides = [1, 1]} : vector<2x16xf32> to vector<1x16xf32>
    %162 = vector.extract_strided_slice %159 {offsets = [0, 0], sizes = [1, 16], strides = [1, 1]} : vector<2x16xf32> to vector<1x16xf32>
    %163 = tpu.concatenate %161, %137, %162 in 0 : vector<1x16xf32>, vector<16x16xf32>, vector<1x16xf32> -> vector<18x16xf32>
    %164 = tpu.concatenate %137, %159 in 0 : vector<16x16xf32>, vector<2x16xf32> -> vector<18x16xf32>
    %cst_67 = arith.constant 2.000000e+00 : f32
    %165 = vector.broadcast %cst_67 : f32 to vector<18x16xf32>
    %166 = arith.mulf %165, %163 : vector<18x16xf32>
    %167 = arith.addf %160, %166 : vector<18x16xf32>
    %168 = arith.addf %167, %164 : vector<18x16xf32>
    %169 = vector.broadcast %15 : vector<18x1xf32> to vector<18x16xf32>
    %170 = arith.mulf %168, %169 : vector<18x16xf32>
    %171 = vector.extract_strided_slice %170 {offsets = [1, 0], sizes = [16, 16], strides = [1, 1]} : vector<18x16xf32> to vector<16x16xf32>
    %172 = vector.extract_strided_slice %170 {offsets = [0, 0], sizes = [16, 16], strides = [1, 1]} : vector<18x16xf32> to vector<16x16xf32>
    %173 = vector.extract_strided_slice %170 {offsets = [2, 0], sizes = [16, 16], strides = [1, 1]} : vector<18x16xf32> to vector<16x16xf32>
    %cst_68 = arith.constant 4.000000e+00 : f32
    %174 = vector.broadcast %cst_68 : f32 to vector<16x16xf32>
    %175 = arith.mulf %174, %171 : vector<16x16xf32>
    %176 = arith.subf %175, %172 : vector<16x16xf32>
    %177 = arith.subf %176, %173 : vector<16x16xf32>
    %cst_69 = arith.constant 0.000000e+00 : f32
    %178 = vector.broadcast %cst_69 : f32 to vector<16x1xf32>
    %179 = vector.extract_strided_slice %171 {offsets = [0, 0], sizes = [16, 15], strides = [1, 1]} : vector<16x16xf32> to vector<16x15xf32>
    %180 = tpu.concatenate %178, %179 in 1 : vector<16x1xf32>, vector<16x15xf32> -> vector<16x16xf32>
    %181 = arith.subf %177, %180 : vector<16x16xf32>
    %cst_70 = arith.constant 0.000000e+00 : f32
    %182 = vector.broadcast %cst_70 : f32 to vector<16x1xf32>
    %183 = vector.extract_strided_slice %171 {offsets = [0, 1], sizes = [16, 15], strides = [1, 1]} : vector<16x16xf32> to vector<16x15xf32>
    %184 = tpu.concatenate %183, %182 in 1 : vector<16x15xf32>, vector<16x1xf32> -> vector<16x16xf32>
    %185 = arith.subf %181, %184 : vector<16x16xf32>
    %186 = arith.subf %127, %185 : vector<16x16xf32>
    %187 = arith.mulf %186, %186 : vector<16x16xf32>
    %188 = arith.addf %101, %187 : vector<16x16xf32>
    %c0_71 = arith.constant 0 : index
    %c2 = arith.constant 2 : index
    %c0_72 = arith.constant 0 : index
    %c0_73 = arith.constant 0 : index
    %189 = vector.load %arg2[%c0_71, %c2, %c0_72, %c0_73] : memref<1x3x16x16xf32, #tpu.memory_space<vmem>>, vector<1x1x16x16xf32>
    %190 = vector.shape_cast %189 : vector<1x1x16x16xf32> to vector<16x16xf32>
    %c0_74 = arith.constant 0 : index
    %c2_75 = arith.constant 2 : index
    %c0_76 = arith.constant 0 : index
    %c0_77 = arith.constant 0 : index
    %c0_78 = arith.constant 0 : index
    %191 = vector.load %arg3[%c0_74, %c2_75, %c0_76, %c0_77, %c0_78] : memref<1x3x1x2x16xf32, #tpu.memory_space<vmem>>, vector<1x1x1x2x16xf32>
    %192 = vector.shape_cast %191 : vector<1x1x1x2x16xf32> to vector<2x16xf32>
    %c0_79 = arith.constant 0 : index
    %c2_80 = arith.constant 2 : index
    %c0_81 = arith.constant 0 : index
    %c0_82 = arith.constant 0 : index
    %193 = vector.load %arg4[%c0_79, %c2_80, %c0_81, %c0_82] : memref<1x3x16x16xf32, #tpu.memory_space<vmem>>, vector<1x1x16x16xf32>
    %194 = vector.shape_cast %193 : vector<1x1x16x16xf32> to vector<16x16xf32>
    %c0_83 = arith.constant 0 : index
    %c2_84 = arith.constant 2 : index
    %c0_85 = arith.constant 0 : index
    %c0_86 = arith.constant 0 : index
    %c0_87 = arith.constant 0 : index
    %195 = vector.load %arg5[%c0_83, %c2_84, %c0_85, %c0_86, %c0_87] : memref<1x3x1x4x16xf32, #tpu.memory_space<vmem>>, vector<1x1x1x4x16xf32>
    %196 = vector.shape_cast %195 : vector<1x1x1x4x16xf32> to vector<4x16xf32>
    %197 = vector.extract_strided_slice %192 {offsets = [0, 0], sizes = [1, 16], strides = [1, 1]} : vector<2x16xf32> to vector<1x16xf32>
    %198 = vector.extract_strided_slice %190 {offsets = [0, 0], sizes = [15, 16], strides = [1, 1]} : vector<16x16xf32> to vector<15x16xf32>
    %199 = tpu.concatenate %197, %198 in 0 : vector<1x16xf32>, vector<15x16xf32> -> vector<16x16xf32>
    %200 = vector.extract_strided_slice %190 {offsets = [1, 0], sizes = [15, 16], strides = [1, 1]} : vector<16x16xf32> to vector<15x16xf32>
    %201 = vector.extract_strided_slice %192 {offsets = [1, 0], sizes = [1, 16], strides = [1, 1]} : vector<2x16xf32> to vector<1x16xf32>
    %202 = tpu.concatenate %200, %201 in 0 : vector<15x16xf32>, vector<1x16xf32> -> vector<16x16xf32>
    %cst_88 = arith.constant 4.000000e+00 : f32
    %203 = vector.broadcast %cst_88 : f32 to vector<16x16xf32>
    %204 = arith.mulf %203, %190 : vector<16x16xf32>
    %205 = arith.subf %204, %199 : vector<16x16xf32>
    %206 = arith.subf %205, %202 : vector<16x16xf32>
    %cst_89 = arith.constant 0.000000e+00 : f32
    %207 = vector.broadcast %cst_89 : f32 to vector<16x1xf32>
    %208 = vector.extract_strided_slice %190 {offsets = [0, 0], sizes = [16, 15], strides = [1, 1]} : vector<16x16xf32> to vector<16x15xf32>
    %209 = tpu.concatenate %207, %208 in 1 : vector<16x1xf32>, vector<16x15xf32> -> vector<16x16xf32>
    %210 = arith.subf %206, %209 : vector<16x16xf32>
    %cst_90 = arith.constant 0.000000e+00 : f32
    %211 = vector.broadcast %cst_90 : f32 to vector<16x1xf32>
    %212 = vector.extract_strided_slice %190 {offsets = [0, 1], sizes = [16, 15], strides = [1, 1]} : vector<16x16xf32> to vector<16x15xf32>
    %213 = tpu.concatenate %212, %211 in 1 : vector<16x15xf32>, vector<16x1xf32> -> vector<16x16xf32>
    %214 = arith.subf %210, %213 : vector<16x16xf32>
    %cst_91 = arith.constant 0.000000e+00 : f32
    %215 = vector.broadcast %cst_91 : f32 to vector<16x1xf32>
    %216 = vector.extract_strided_slice %194 {offsets = [0, 0], sizes = [16, 15], strides = [1, 1]} : vector<16x16xf32> to vector<16x15xf32>
    %217 = tpu.concatenate %215, %216 in 1 : vector<16x1xf32>, vector<16x15xf32> -> vector<16x16xf32>
    %cst_92 = arith.constant 2.000000e+00 : f32
    %218 = vector.broadcast %cst_92 : f32 to vector<16x16xf32>
    %219 = arith.mulf %218, %194 : vector<16x16xf32>
    %220 = arith.addf %217, %219 : vector<16x16xf32>
    %cst_93 = arith.constant 0.000000e+00 : f32
    %221 = vector.broadcast %cst_93 : f32 to vector<16x1xf32>
    %222 = vector.extract_strided_slice %194 {offsets = [0, 1], sizes = [16, 15], strides = [1, 1]} : vector<16x16xf32> to vector<16x15xf32>
    %223 = tpu.concatenate %222, %221 in 1 : vector<16x15xf32>, vector<16x1xf32> -> vector<16x16xf32>
    %224 = arith.addf %220, %223 : vector<16x16xf32>
    %225 = vector.extract_strided_slice %196 {offsets = [0, 0], sizes = [2, 16], strides = [1, 1]} : vector<4x16xf32> to vector<2x16xf32>
    %cst_94 = arith.constant 0.000000e+00 : f32
    %226 = vector.broadcast %cst_94 : f32 to vector<2x1xf32>
    %227 = vector.extract_strided_slice %225 {offsets = [0, 0], sizes = [2, 15], strides = [1, 1]} : vector<2x16xf32> to vector<2x15xf32>
    %228 = tpu.concatenate %226, %227 in 1 : vector<2x1xf32>, vector<2x15xf32> -> vector<2x16xf32>
    %cst_95 = arith.constant 2.000000e+00 : f32
    %229 = vector.broadcast %cst_95 : f32 to vector<2x16xf32>
    %230 = arith.mulf %229, %225 : vector<2x16xf32>
    %231 = arith.addf %228, %230 : vector<2x16xf32>
    %cst_96 = arith.constant 0.000000e+00 : f32
    %232 = vector.broadcast %cst_96 : f32 to vector<2x1xf32>
    %233 = vector.extract_strided_slice %225 {offsets = [0, 1], sizes = [2, 15], strides = [1, 1]} : vector<2x16xf32> to vector<2x15xf32>
    %234 = tpu.concatenate %233, %232 in 1 : vector<2x15xf32>, vector<2x1xf32> -> vector<2x16xf32>
    %235 = arith.addf %231, %234 : vector<2x16xf32>
    %236 = vector.extract_strided_slice %196 {offsets = [2, 0], sizes = [2, 16], strides = [1, 1]} : vector<4x16xf32> to vector<2x16xf32>
    %cst_97 = arith.constant 0.000000e+00 : f32
    %237 = vector.broadcast %cst_97 : f32 to vector<2x1xf32>
    %238 = vector.extract_strided_slice %236 {offsets = [0, 0], sizes = [2, 15], strides = [1, 1]} : vector<2x16xf32> to vector<2x15xf32>
    %239 = tpu.concatenate %237, %238 in 1 : vector<2x1xf32>, vector<2x15xf32> -> vector<2x16xf32>
    %cst_98 = arith.constant 2.000000e+00 : f32
    %240 = vector.broadcast %cst_98 : f32 to vector<2x16xf32>
    %241 = arith.mulf %240, %236 : vector<2x16xf32>
    %242 = arith.addf %239, %241 : vector<2x16xf32>
    %cst_99 = arith.constant 0.000000e+00 : f32
    %243 = vector.broadcast %cst_99 : f32 to vector<2x1xf32>
    %244 = vector.extract_strided_slice %236 {offsets = [0, 1], sizes = [2, 15], strides = [1, 1]} : vector<2x16xf32> to vector<2x15xf32>
    %245 = tpu.concatenate %244, %243 in 1 : vector<2x15xf32>, vector<2x1xf32> -> vector<2x16xf32>
    %246 = arith.addf %242, %245 : vector<2x16xf32>
    %247 = tpu.concatenate %235, %224 in 0 : vector<2x16xf32>, vector<16x16xf32> -> vector<18x16xf32>
    %248 = vector.extract_strided_slice %235 {offsets = [1, 0], sizes = [1, 16], strides = [1, 1]} : vector<2x16xf32> to vector<1x16xf32>
    %249 = vector.extract_strided_slice %246 {offsets = [0, 0], sizes = [1, 16], strides = [1, 1]} : vector<2x16xf32> to vector<1x16xf32>
    %250 = tpu.concatenate %248, %224, %249 in 0 : vector<1x16xf32>, vector<16x16xf32>, vector<1x16xf32> -> vector<18x16xf32>
    %251 = tpu.concatenate %224, %246 in 0 : vector<16x16xf32>, vector<2x16xf32> -> vector<18x16xf32>
    %cst_100 = arith.constant 2.000000e+00 : f32
    %252 = vector.broadcast %cst_100 : f32 to vector<18x16xf32>
    %253 = arith.mulf %252, %250 : vector<18x16xf32>
    %254 = arith.addf %247, %253 : vector<18x16xf32>
    %255 = arith.addf %254, %251 : vector<18x16xf32>
    %256 = vector.broadcast %15 : vector<18x1xf32> to vector<18x16xf32>
    %257 = arith.mulf %255, %256 : vector<18x16xf32>
    %258 = vector.extract_strided_slice %257 {offsets = [1, 0], sizes = [16, 16], strides = [1, 1]} : vector<18x16xf32> to vector<16x16xf32>
    %259 = vector.extract_strided_slice %257 {offsets = [0, 0], sizes = [16, 16], strides = [1, 1]} : vector<18x16xf32> to vector<16x16xf32>
    %260 = vector.extract_strided_slice %257 {offsets = [2, 0], sizes = [16, 16], strides = [1, 1]} : vector<18x16xf32> to vector<16x16xf32>
    %cst_101 = arith.constant 4.000000e+00 : f32
    %261 = vector.broadcast %cst_101 : f32 to vector<16x16xf32>
    %262 = arith.mulf %261, %258 : vector<16x16xf32>
    %263 = arith.subf %262, %259 : vector<16x16xf32>
    %264 = arith.subf %263, %260 : vector<16x16xf32>
    %cst_102 = arith.constant 0.000000e+00 : f32
    %265 = vector.broadcast %cst_102 : f32 to vector<16x1xf32>
    %266 = vector.extract_strided_slice %258 {offsets = [0, 0], sizes = [16, 15], strides = [1, 1]} : vector<16x16xf32> to vector<16x15xf32>
    %267 = tpu.concatenate %265, %266 in 1 : vector<16x1xf32>, vector<16x15xf32> -> vector<16x16xf32>
    %268 = arith.subf %264, %267 : vector<16x16xf32>
    %cst_103 = arith.constant 0.000000e+00 : f32
    %269 = vector.broadcast %cst_103 : f32 to vector<16x1xf32>
    %270 = vector.extract_strided_slice %258 {offsets = [0, 1], sizes = [16, 15], strides = [1, 1]} : vector<16x16xf32> to vector<16x15xf32>
    %271 = tpu.concatenate %270, %269 in 1 : vector<16x15xf32>, vector<16x1xf32> -> vector<16x16xf32>
    %272 = arith.subf %268, %271 : vector<16x16xf32>
    %273 = arith.subf %214, %272 : vector<16x16xf32>
    %274 = arith.mulf %273, %273 : vector<16x16xf32>
    %275 = arith.addf %188, %274 : vector<16x16xf32>
    %c0_104 = arith.constant 0 : index
    %c0_105 = arith.constant 0 : index
    %276 = vector.load %arg7[%c0_104, %c0_105] : memref<16x16xf32, #tpu.memory_space<vmem>>, vector<16x16xf32>
    %277 = arith.addf %276, %275 : vector<16x16xf32>
    %c0_106 = arith.constant 0 : index
    %c0_107 = arith.constant 0 : index
    %278 = vector.load %arg7[%c0_106, %c0_107] : memref<16x16xf32, #tpu.memory_space<vmem>>, vector<16x16xf32>
    tpu.vector_store %arg7[%c0_106, %c0_107], %277 {strides = array<i32>} : memref<16x16xf32, #tpu.memory_space<vmem>>, vector<16x16xf32>,
    %c0_i32_108 = arith.constant 0 : i32
    %279 = arith.cmpi eq, %arg1, %c0_i32_108 : i32
    %280 = arith.extui %279 : i1 to i32
    %c0_i32_109 = arith.constant 0 : i32
    %281 = arith.cmpi ne, %280, %c0_i32_109 : i32
    scf.if %281 {
      %c0_110 = arith.constant 0 : index
      %c0_111 = arith.constant 0 : index
      %282 = vector.load %arg7[%c0_110, %c0_111] : memref<16x16xf32, #tpu.memory_space<vmem>>, vector<16x16xf32>
      %283 = vector.shape_cast %282 : vector<16x16xf32> to vector<1x16x16xf32>
      %cst_112 = arith.constant dense<0.000000e+00> : vector<1xf32>
      %284 = vector.multi_reduction <add>, %283, %cst_112 [1, 2] : vector<1x16x16xf32> to vector<1xf32>
      %285 = vector.shape_cast %284 : vector<1xf32> to vector<1x1x1xf32>
      %286 = vector.extract %285[0, 0, 0] : f32 from vector<1x1x1xf32>
      %287 = vector.broadcast %286 : f32 to vector<1x1xf32>
      %288 = vector.shape_cast %287 : vector<1x1xf32> to vector<1x1xf32>
      %289 = vector.broadcast %288 : vector<1x1xf32> to vector<8x128xf32>
      %c0_113 = arith.constant 0 : index
      %c0_114 = arith.constant 0 : index
      %c0_115 = arith.constant 0 : index
      %290 = vector.load %arg6[%c0_113, %c0_114, %c0_115] : memref<1x8x128xf32, #tpu.memory_space<vmem>>, vector<1x8x128xf32>
      %291 = vector.shape_cast %290 : vector<1x8x128xf32> to vector<8x128xf32>
      %292 = vector.shape_cast %289 : vector<8x128xf32> to vector<1x8x128xf32>
      tpu.vector_store %arg6[%c0_113, %c0_114, %c0_115], %292 {strides = array<i32>} : memref<1x8x128xf32, #tpu.memory_space<vmem>>, vector<1x8x128xf32>,
    } else {
    }
    return
  }
  func.func @transform_0(%arg0: i32, %arg1: i32) -> (i32, i32, i32, i32) {
    %c0_i32 = arith.constant 0 : i32
    %c0_i32_0 = arith.constant 0 : i32
    %c0_i32_1 = arith.constant 0 : i32
    return %arg0, %c0_i32, %arg1, %c0_i32_0 : i32, i32, i32, i32
  }
  func.func @transform_1(%arg0: i32, %arg1: i32) -> (i32, i32, i32, i32, i32) {
    %c0_i32 = arith.constant 0 : i32
    %c0_i32_0 = arith.constant 0 : i32
    %c0_i32_1 = arith.constant 0 : i32
    %c0_i32_2 = arith.constant 0 : i32
    return %arg0, %c0_i32, %arg1, %c0_i32_0, %c0_i32_1 : i32, i32, i32, i32, i32
  }
  func.func @transform_2(%arg0: i32, %arg1: i32) -> (i32, i32, i32, i32) {
    %c0_i32 = arith.constant 0 : i32
    %c0_i32_0 = arith.constant 0 : i32
    %c0_i32_1 = arith.constant 0 : i32
    return %arg0, %c0_i32, %arg1, %c0_i32_0 : i32, i32, i32, i32
  }
  func.func @transform_3(%arg0: i32, %arg1: i32) -> (i32, i32, i32, i32, i32) {
    %c0_i32 = arith.constant 0 : i32
    %c0_i32_0 = arith.constant 0 : i32
    %c0_i32_1 = arith.constant 0 : i32
    %c0_i32_2 = arith.constant 0 : i32
    return %arg0, %c0_i32, %arg1, %c0_i32_0, %c0_i32_1 : i32, i32, i32, i32, i32
  }
  func.func @transform_4(%arg0: i32, %arg1: i32) -> (i32, i32, i32) {
    %c0_i32 = arith.constant 0 : i32
    %c0_i32_0 = arith.constant 0 : i32
    %c0_i32_1 = arith.constant 0 : i32
    return %arg0, %c0_i32, %c0_i32_0 : i32, i32, i32
  }
}

</mosaic_0001>

<llo_original>
// kernel: gauss_loss.1
$region0: #{gauss_loss.1}
  #allocation0 [shape = 'u32[]', space=smem, size = 0x4, offset = 0x4, fixed_abs, tag = 'smem constant byte address 0x4 - core index']
  #allocation1 [shape = 'u32[144,128]{1,0:T(1,128)}', space=vmem, size = 0x12000, scoped, tag = 'internal scratch']
  #allocation2 [shape = 'f32[16,16]{1,0:T(8,128)}', space=vmem, size = 0x2000, scoped, tag = 'scratch operand']
  %s0 = inlined_call_operand.hbm [shape: f32[2,3,16,16], index: 0, kind: input, shape index: {}]
  %s1 = inlined_call_operand.vmem [shape: f32[2,3,1,2,16], index: 1, kind: input, shape index: {}]
  %s2 = inlined_call_operand.hbm [shape: f32[2,3,16,16], index: 2, kind: input, shape index: {}]
  %s3 = inlined_call_operand.vmem [shape: f32[2,3,1,4,16], index: 3, kind: input, shape index: {}]
  %s4 = inlined_call_operand.vmem [shape: f32[2,8,128], index: 4, kind: output, shape index: {}]
  %s5 = sld [smem:[#allocation0]]
  $region65: #{gauss_loss.1} parent=0
    _
  %s7 = ssub.s32 1, %s5
  %s8 = scalar_select 0, %s7, %s5
  $region1: #{gauss_loss.1} parent=0
    #allocation3 [shape = 'u8[49152]{0}', space=vmem, size = 0xc000, scoped, tag = 'input window, operand 0']
    #allocation4 [shape = 's32[2]{0}', space=sflag, size = 0x8, scoped, tag = 'scoped memory for gauss_loss.1']
    #allocation5 [shape = 'u8[49152]{0}', space=vmem, size = 0xc000, scoped, tag = 'input window, operand 2']
    #allocation6 [shape = 's32[2]{0}', space=sflag, size = 0x8, scoped, tag = 'scoped memory for gauss_loss.1']
    %9 = vsyncpa [#allocation4], 0
    %s10 = scalar_lea.sflag [#allocation4], 1
    %11 = vsyncpa %s10, 0
    %12 = vsyncpa [#allocation6], 0
    %s13 = scalar_lea.sflag [#allocation6], 1
    %14 = vsyncpa %s13, 0
    loop: start=0, step=1, limit=4
    $region2: #{gauss_loss.1} parent=1 // loop_pre_header
      _
    $region3: #{gauss_loss.1} parent=1 // loop_header
      %s16 = sphi 0, %s20
      %p17 = scmp.ge.s32.totalorder %s16, 4
      %s23 = sphi 0, %s35
      %s24 = sphi 0, %s31
      %s25 = sphi 0, %s23
      %s26 = sphi 0, %s24
      %s27 = sphi 0, %s25
      %s28 = sphi 0, %s26
      %s40 = sphi 0, %s42
      %s43 = sphi 0, %s40
      %s44 = sphi 0, %s43
      %s60 = sphi 0, %s44
      %s68 = sphi 0, %s70
      %s71 = sphi 0, %s68
      %s72 = sphi 0, %s71
      %s88 = sphi 0, %s72
      %s96 = sphi 0, %s98
      %s99 = sphi 0, %s96
      %s100 = sphi 0, %s99
      %s116 = sphi 0, %s100
      %s124 = sphi 0, %s126
      %s127 = sphi 0, %s124
      %s128 = sphi 0, %s127
      %s144 = sphi 0, %s128
      %s150 = sphi 0, %s152
      %s153 = sphi 0, %s150
      %s154 = sphi 0, %s153
      %s170 = sphi 0, %s154
    $region4: #{gauss_loss.1} parent=1 // loop_header_branch
      %19 = sbr.rel (%p17) target = $region8
    $region5: #{gauss_loss.1} parent=1 // loop_body
      %s21 = ssub.s32 %s16, 1
      %s22 = ssub.s32 %s16, 2
      %s29 = sadd.s32 1, %s24
      %p30 = scmp.ge.s32.totalorder %s29, 1
      %s31 = scalar_select %p30, 0, %s29
      %s32 = sadd.s32 1, %s23
      %s33 = scalar_select %p30, %s32, %s23
      %p34 = scmp.ge.s32.totalorder %s33, 2
      %s35 = scalar_select %p34, 0, %s33
      %s36 = ssub.s32 %s23, %s35
      %s37 = ssub.s32 %s24, %s31
      %s38 = sor.u32 %s36, %s37
      %p39 = scmp.eq.s32.totalorder %s38, 0
      %s41 = sadd.s32 %s40, 1
      %s42 = scalar_select %p39, %s40, %s41
      %p45 = pneg %p39
      %p46 = scmp.eq.s32.totalorder %s16, 1
      %p47 = por %p45, %p46
      %p48 = scmp.ne.s32.totalorder %s40, %s43
      %p49 = scmp.eq.s32.totalorder %s16, 0
      %p50 = por %p48, %p49
      %p51 = scmp.ne.s32.totalorder %s40, %s43
      %p52 = scmp.eq.s32.totalorder %s21, 1
      %p53 = por %p51, %p52
      %p54 = scmp.ne.s32.totalorder %s43, %s44
      %p55 = scmp.eq.s32.totalorder %s21, 0
      %p56 = por %p54, %p55
      %p57 = scmp.ne.s32.totalorder %s43, %s44
      %p58 = scmp.eq.s32.totalorder %s22, 1
      %p59 = por %p57, %p58
      %p61 = scmp.ne.s32.totalorder %s44, %s60
      %p62 = scmp.eq.s32.totalorder %s22, 0
      %p63 = por %p61, %p62
      %s64 = ssub.s32 %s23, %s35
      %s65 = ssub.s32 %s24, %s31
      %s66 = sor.u32 %s64, %s65
      %p67 = scmp.eq.s32.totalorder %s66, 0
      %s69 = sadd.s32 %s68, 1
      %s70 = scalar_select %p67, %s68, %s69
      %p73 = pneg %p67
      %p74 = scmp.eq.s32.totalorder %s16, 1
      %p75 = por %p73, %p74
      %p76 = scmp.ne.s32.totalorder %s68, %s71
      %p77 = scmp.eq.s32.totalorder %s16, 0
      %p78 = por %p76, %p77
      %p79 = scmp.ne.s32.totalorder %s68, %s71
      %p80 = scmp.eq.s32.totalorder %s21, 1
      %p81 = por %p79, %p80
      %p82 = scmp.ne.s32.totalorder %s71, %s72
      %p83 = scmp.eq.s32.totalorder %s21, 0
      %p84 = por %p82, %p83
      %p85 = scmp.ne.s32.totalorder %s71, %s72
      %p86 = scmp.eq.s32.totalorder %s22, 1
      %p87 = por %p85, %p86
      %p89 = scmp.ne.s32.totalorder %s72, %s88
      %p90 = scmp.eq.s32.totalorder %s22, 0
      %p91 = por %p89, %p90
      %s92 = ssub.s32 %s23, %s35
      %s93 = ssub.s32 %s24, %s31
      %s94 = sor.u32 %s92, %s93
      %p95 = scmp.eq.s32.totalorder %s94, 0
      %s97 = sadd.s32 %s96, 1
      %s98 = scalar_select %p95, %s96, %s97
      %p101 = pneg %p95
      %p102 = scmp.eq.s32.totalorder %s16, 1
      %p103 = por %p101, %p102
      %p104 = scmp.ne.s32.totalorder %s96, %s99
      %p105 = scmp.eq.s32.totalorder %s16, 0
      %p106 = por %p104, %p105
      %p107 = scmp.ne.s32.totalorder %s96, %s99
      %p108 = scmp.eq.s32.totalorder %s21, 1
      %p109 = por %p107, %p108
      %p110 = scmp.ne.s32.totalorder %s99, %s100
      %p111 = scmp.eq.s32.totalorder %s21, 0
      %p112 = por %p110, %p111
      %p113 = scmp.ne.s32.totalorder %s99, %s100
      %p114 = scmp.eq.s32.totalorder %s22, 1
      %p115 = por %p113, %p114
      %p117 = scmp.ne.s32.totalorder %s100, %s116
      %p118 = scmp.eq.s32.totalorder %s22, 0
      %p119 = por %p117, %p118
      %s120 = ssub.s32 %s23, %s35
      %s121 = ssub.s32 %s24, %s31
      %s122 = sor.u32 %s120, %s121
      %p123 = scmp.eq.s32.totalorder %s122, 0
      %s125 = sadd.s32 %s124, 1
      %s126 = scalar_select %p123, %s124, %s125
      %p129 = pneg %p123
      %p130 = scmp.eq.s32.totalorder %s16, 1
      %p131 = por %p129, %p130
      %p132 = scmp.ne.s32.totalorder %s124, %s127
      %p133 = scmp.eq.s32.totalorder %s16, 0
      %p134 = por %p132, %p133
      %p135 = scmp.ne.s32.totalorder %s124, %s127
      %p136 = scmp.eq.s32.totalorder %s21, 1
      %p137 = por %p135, %p136
      %p138 = scmp.ne.s32.totalorder %s127, %s128
      %p139 = scmp.eq.s32.totalorder %s21, 0
      %p140 = por %p138, %p139
      %p141 = scmp.ne.s32.totalorder %s127, %s128
      %p142 = scmp.eq.s32.totalorder %s22, 1
      %p143 = por %p141, %p142
      %p145 = scmp.ne.s32.totalorder %s128, %s144
      %p146 = scmp.eq.s32.totalorder %s22, 0
      %p147 = por %p145, %p146
      %s148 = ssub.s32 %s23, %s35
      %p149 = scmp.eq.s32.totalorder %s148, 0
      %s151 = sadd.s32 %s150, 1
      %s152 = scalar_select %p149, %s150, %s151
      %p155 = pneg %p149
      %p156 = scmp.eq.s32.totalorder %s16, 1
      %p157 = por %p155, %p156
      %p158 = scmp.ne.s32.totalorder %s150, %s153
      %p159 = scmp.eq.s32.totalorder %s16, 0
      %p160 = por %p158, %p159
      %p161 = scmp.ne.s32.totalorder %s150, %s153
      %p162 = scmp.eq.s32.totalorder %s21, 1
      %p163 = por %p161, %p162
      %p164 = scmp.ne.s32.totalorder %s153, %s154
      %p165 = scmp.eq.s32.totalorder %s21, 0
      %p166 = por %p164, %p165
      %p167 = scmp.ne.s32.totalorder %s153, %s154
      %p168 = scmp.eq.s32.totalorder %s22, 1
      %p169 = por %p167, %p168
      %p171 = scmp.ne.s32.totalorder %s154, %s170
      %p172 = scmp.eq.s32.totalorder %s22, 0
      %p173 = por %p171, %p172
      %p174 = scmp.le.s32.totalorder 1, %s16
      %p175 = scmp.lt.s32.totalorder %s16, 3
      %p176 = pnand %p174, %p175
      %p177 = pneg %p176
      // Predicated region
      $region9: #{gauss_loss.1} parent=5 // pred_check
        _
      $region10: #{gauss_loss.1} parent=5 // pred_check_branch
        %179 = sbr.rel (%p176) target = $region12
      $region11: #{gauss_loss.1} parent=5 // pred_region
        %s180 = ssub.s32 %s16, 1
      $region12: #{gauss_loss.1} parent=5 // pred_fallthru
        _
      %p181 = scmp.lt.s32.totalorder %s16, 2
      // Predicated region
      $region13: #{gauss_loss.1} parent=5 // pred_check
        %p182 = pneg %p181
      $region14: #{gauss_loss.1} parent=5 // pred_check_branch
        %184 = sbr.rel (%p182) target = $region16
      $region15: #{gauss_loss.1} parent=5 // pred_region
        // Predicated region
        $region17: #{gauss_loss.1} parent=15 // pred_check
          %p185 = pneg %p50
        $region18: #{gauss_loss.1} parent=15 // pred_check_branch
          %187 = sbr.rel (%p185) target = $region20
        $region19: #{gauss_loss.1} parent=15 // pred_region
          %s188 = sand.u32 %s40, 1
          %s189 = scalar_lea.sflag [#allocation4], %s188
          %s190 = sand.u32 %s40, 1
          %s191 = smul.addr %s190, 48
          %s192 = scalar_lea.vmem [#allocation3], %s191
          %s193 = smul.u32 2, %s24
          %s195 = ssub.s32 768, 768
          %196 = vsyncadd %s189, %s195
          %s197 = smul.addr %s23, 6
          %s198 = sadd.s32 %s193, %s197
          %s199 = smul.addr %s198, 128
          %s200 = scalar_lea.hbm %s0, %s199
          %s201 = sshll.u32 %s192, 4
          %s202 = int_to_ptr.vmem [resolvable:$true] %s201
          %207 = dma.hbm_to_vmem [thread:$0]  %s200, 768, %s202, %s189, 128, 128, 8
        $region20: #{gauss_loss.1} parent=15 // pred_fallthru
          _
        // Predicated region
        $region21: #{gauss_loss.1} parent=15 // pred_check
          %p208 = pneg %p78
        $region22: #{gauss_loss.1} parent=15 // pred_check_branch
          %210 = sbr.rel (%p208) target = $region24
        $region23: #{gauss_loss.1} parent=15 // pred_region
          %p211 = scmp.lt.s32.totalorder %s23, 1
          %s212 = scalar_select %p211, %s23, 1
          %p213 = scmp.lt.s32.totalorder %s24, 0
          %s214 = scalar_select %p213, %s24, 0
          %s215 = smul.addr %s212, 3
          %s216 = sadd.s32 %s214, %s215
          %s217 = smul.addr %s216, 2
          %s218 = scalar_lea.vmem %s1, %s217
        $region24: #{gauss_loss.1} parent=15 // pred_fallthru
          _
        // Predicated region
        $region25: #{gauss_loss.1} parent=15 // pred_check
          %p219 = pneg %p106
        $region26: #{gauss_loss.1} parent=15 // pred_check_branch
          %221 = sbr.rel (%p219) target = $region28
        $region27: #{gauss_loss.1} parent=15 // pred_region
          %s222 = sand.u32 %s96, 1
          %s223 = scalar_lea.sflag [#allocation6], %s222
          %s224 = sand.u32 %s96, 1
          %s225 = smul.addr %s224, 48
          %s226 = scalar_lea.vmem [#allocation5], %s225
          %s227 = smul.u32 2, %s24
          %s229 = ssub.s32 768, 768
          %230 = vsyncadd %s223, %s229
          %s231 = smul.addr %s23, 6
          %s232 = sadd.s32 %s227, %s231
          %s233 = smul.addr %s232, 128
          %s234 = scalar_lea.hbm %s2, %s233
          %s235 = sshll.u32 %s226, 4
          %s236 = int_to_ptr.vmem [resolvable:$true] %s235
          %241 = dma.hbm_to_vmem [thread:$0]  %s234, 768, %s236, %s223, 128, 128, 8
        $region28: #{gauss_loss.1} parent=15 // pred_fallthru
          _
        // Predicated region
        $region29: #{gauss_loss.1} parent=15 // pred_check
          %p242 = pneg %p134
        $region30: #{gauss_loss.1} parent=15 // pred_check_branch
          %244 = sbr.rel (%p242) target = $region32
        $region31: #{gauss_loss.1} parent=15 // pred_region
          %p245 = scmp.lt.s32.totalorder %s23, 1
          %s246 = scalar_select %p245, %s23, 1
          %p247 = scmp.lt.s32.totalorder %s24, 0
          %s248 = scalar_select %p247, %s24, 0
          %s249 = smul.addr %s246, 3
          %s250 = sadd.s32 %s248, %s249
          %s251 = smul.addr %s250, 4
          %s252 = scalar_lea.vmem %s3, %s251
        $region32: #{gauss_loss.1} parent=15 // pred_fallthru
          _
      $region16: #{gauss_loss.1} parent=5 // pred_fallthru
        _
      %p253 = scmp.le.s32.totalorder 1, %s16
      %p254 = scmp.lt.s32.totalorder %s16, 3
      %p255 = pnand %p253, %p254
      %p256 = pneg %p255
      // Predicated region
      $region33: #{gauss_loss.1} parent=5 // pred_check
        _
      $region34: #{gauss_loss.1} parent=5 // pred_check_branch
        %258 = sbr.rel (%p255) target = $region36
      $region35: #{gauss_loss.1} parent=5 // pred_region
        %s259 = ssub.s32 %s16, 1
        %s260 = sand.u32 %s43, 1
        %s261 = scalar_lea.sflag [#allocation4], %s260
        %s262 = sand.u32 %s43, 1
        %s263 = smul.addr %s262, 48
        %s264 = scalar_lea.vmem [#allocation3], %s263
        // Predicated region
        $region37: #{gauss_loss.1} parent=35 // pred_check
          %p265 = pneg %p56
        $region38: #{gauss_loss.1} parent=35 // pred_check_branch
          %267 = sbr.rel (%p265) target = $region40
        $region39: #{gauss_loss.1} parent=35 // pred_region
          %268 = dma.done %s261, 768
        $region40: #{gauss_loss.1} parent=35 // pred_fallthru
          _
        %s269 = sand.u32 %s99, 1
        %s270 = scalar_lea.sflag [#allocation6], %s269
        %s271 = sand.u32 %s99, 1
        %s272 = smul.addr %s271, 48
        %s273 = scalar_lea.vmem [#allocation5], %s272
        // Predicated region
        $region41: #{gauss_loss.1} parent=35 // pred_check
          %p274 = pneg %p112
        $region42: #{gauss_loss.1} parent=35 // pred_check_branch
          %276 = sbr.rel (%p274) target = $region44
        $region43: #{gauss_loss.1} parent=35 // pred_region
          %277 = dma.done %s270, 768
        $region44: #{gauss_loss.1} parent=35 // pred_fallthru
          _
        %s278 = sand.u32 %s43, 1
        %s279 = scalar_lea.sflag [#allocation4], %s278
        %s280 = sand.u32 %s43, 1
        %s281 = smul.addr %s280, 48
        %s282 = scalar_lea.vmem [#allocation3], %s281
        %p283 = pneg %p56
        %p284 = pneg %p53
        %p285 = scmp.lt.s32.totalorder %s25, 1
        %s286 = scalar_select %p285, %s25, 1
        %p287 = scmp.lt.s32.totalorder %s26, 0
        %s288 = scalar_select %p287, %s26, 0
        %s289 = smul.addr %s286, 3
        %s290 = sadd.s32 %s288, %s289
        %s291 = smul.addr %s290, 2
        %s292 = scalar_lea.vmem %s1, %s291
        %p293 = pneg %p84
        %p294 = pneg %p81
        %s295 = sand.u32 %s99, 1
        %s296 = scalar_lea.sflag [#allocation6], %s295
        %s297 = sand.u32 %s99, 1
        %s298 = smul.addr %s297, 48
        %s299 = scalar_lea.vmem [#allocation5], %s298
        %p300 = pneg %p112
        %p301 = pneg %p109
        %p302 = scmp.lt.s32.totalorder %s25, 1
        %s303 = scalar_select %p302, %s25, 1
        %p304 = scmp.lt.s32.totalorder %s26, 0
        %s305 = scalar_select %p304, %s26, 0
        %s306 = smul.addr %s303, 3
        %s307 = sadd.s32 %s305, %s306
        %s308 = smul.addr %s307, 4
        %s309 = scalar_lea.vmem %s3, %s308
        %p310 = pneg %p140
        %p311 = pneg %p137
        %p312 = pneg %p166
        %p313 = pneg %p163
        %p314 = scmp.lt.s32.totalorder %s25, 1
        %s315 = scalar_select %p314, %s25, 1
        %s316 = smul.addr %s315, 8
        %s317 = scalar_lea.vmem %s4, %s316
        %s318 = smul.u32 2, %s26
        %p319 = scmp.lt.s32.totalorder %s25, 1
        %s320 = scalar_select %p319, %s25, 1
        %p321 = scmp.lt.s32.totalorder %s26, 0
        %s322 = scalar_select %p321, %s26, 0
        %s323 = smul.addr %s320, 3
        %s324 = sadd.s32 %s322, %s323
        %s325 = smul.addr %s324, 2
        %s326 = scalar_lea.vmem %s1, %s325
        %s327 = smul.u32 2, %s26
        %p328 = scmp.lt.s32.totalorder %s25, 1
        %s329 = scalar_select %p328, %s25, 1
        %p330 = scmp.lt.s32.totalorder %s26, 0
        %s331 = scalar_select %p330, %s26, 0
        %s332 = smul.addr %s329, 3
        %s333 = sadd.s32 %s331, %s332
        %s334 = smul.addr %s333, 4
        %s335 = scalar_lea.vmem %s3, %s334
        %p336 = scmp.lt.s32.totalorder %s25, 1
        %s337 = scalar_select %p336, %s25, 1
        %s338 = smul.addr %s337, 8
        %s339 = scalar_lea.vmem %s4, %s338
        %p340 = scmp.eq.s32.totalorder %s26, 0
        // Predicated region
        $region45: #{gauss_loss.1} parent=35 // pred_check
          %p341 = pneg %p340
        $region46: #{gauss_loss.1} parent=35 // pred_check_branch
          %343 = sbr.rel (%p341) target = $region48
        $region47: #{gauss_loss.1} parent=35 // pred_region
          %vm344 = vcmask 130048
          %345 = vst.msk [vmem:[#allocation2] sm:$0xff] %vm344, 0.0
          %346 = vst.msk [vmem:[#allocation2 + $0x8] sm:$0xff] %vm344, 0.0
        $region48: #{gauss_loss.1} parent=35 // pred_fallthru
          _
        %v347 = vlaneseq
        %v348 = vshrl.u32 %v347, 7
        %v349 = vadd.s32 %v348, 8
        %v350 = vadd.s32 %v348, 16
        %p351 = scmp.gt.s32.totalorder %s26, 0
        %s352 = scalar_select %p351, 4294967295, 0
        %p353 = scmp.lt.s32.totalorder %s26, 0
        %s354 = scalar_select %p353, 18, 17
        %v355 = vstv %s352
        %vm356 = vcmp.gt.s32.totalorder %v348, %v355
        %vm357 = vcmp.gt.s32.totalorder %v349, %v355
        %vm358 = vcmp.gt.s32.totalorder %v350, %v355
        %v359 = vstv %s354
        %vm360 = vcmp.lt.s32.totalorder %v348, %v359
        %vm361 = vcmp.lt.s32.totalorder %v349, %v359
        %vm362 = vcmp.lt.s32.totalorder %v350, %v359
        %vm363 = vmand %vm356, %vm360
        %vm364 = vmand %vm357, %vm361
        %vm365 = vmand %vm358, %vm362
        %v366 = vsel %vm363, 0.0625, 0.0
        %v367 = vsel %vm364, 0.0625, 0.0
        %v368 = vsel %vm365, 0.0625, 0.0
        %v369 = vld [vmem:[%s264] sm:$0xff]
        %v370 = vld [vmem:[%s264 + $0x8] sm:$0xff]
        %v371 = vld [vmem:[%s326] sm:$0x3]
        %v372 = vld [vmem:[%s273] sm:$0xff]
        %v373 = vld [vmem:[%s273 + $0x8] sm:$0xff]
        %v374 = vld [vmem:[%s335] sm:$0xf]
        %vm377 = vcmask 1040384
        %v378 = vrot.slane %v369, 7
        %v379 = vrot.slane %v370, 7
        %v380 = vsel %vm377, %v378, %v379
        %v383 = vsel %vm377, %v371, %v378
        %vm384 = vcmask 1046528
        %v385 = vrot.slane %v369, 1
        %v386 = vrot.slane %v370, 1
        %v387 = vsel %vm384, %v385, %v386
        %v391 = vrot.slane %v371, 2
        %v393 = vsel %vm384, %v386, %v391
        %v394 = vmul.f32 %v369, 4.0
        %v395 = vmul.f32 %v370, 4.0
        %v396 = vsub.f32 %v394, %v383
        %v397 = vsub.f32 %v395, %v380
        %v398 = vsub.f32 %v396, %v387
        %v399 = vsub.f32 %v397, %v393
        %400 = vrot.lane.b32.xlu0 %v369, 1
        %v401 = vpop.permute.xlu0 %400
        %402 = vrot.lane.b32.xlu0 %v370, 1
        %v403 = vpop.permute.xlu0 %402
        %vm406 = vcmask 7168
        %v407 = vsel %vm406, 0.0, %v401
        %v408 = vsel %vm406, 0.0, %v403
        %v409 = vsub.f32 %v398, %v407
        %v410 = vsub.f32 %v399, %v408
        %411 = vrot.lane.b32.xlu0 %v369, 127
        %v412 = vpop.permute.xlu0 %411
        %413 = vrot.lane.b32.xlu0 %v370, 127
        %v414 = vpop.permute.xlu0 %413
        %vm417 = vcmask 121856
        %v418 = vsel %vm417, %v412, 0.0
        %v419 = vsel %vm417, %v414, 0.0
        %v420 = vsub.f32 %v409, %v418
        %v421 = vsub.f32 %v410, %v419
        %424 = vrot.lane.b32.xlu0 %v372, 1
        %v425 = vpop.permute.xlu0 %424
        %426 = vrot.lane.b32.xlu0 %v373, 1
        %v427 = vpop.permute.xlu0 %426
        %v430 = vsel %vm406, 0.0, %v425
        %v431 = vsel %vm406, 0.0, %v427
        %v432 = vmul.f32 %v372, 2.0
        %v433 = vmul.f32 %v373, 2.0
        %v434 = vadd.f32 %v430, %v432
        %v435 = vadd.f32 %v431, %v433
        %436 = vrot.lane.b32.xlu0 %v372, 127
        %v437 = vpop.permute.xlu0 %436
        %438 = vrot.lane.b32.xlu0 %v373, 127
        %v439 = vpop.permute.xlu0 %438
        %v442 = vsel %vm417, %v437, 0.0
        %v443 = vsel %vm417, %v439, 0.0
        %v444 = vadd.f32 %v434, %v442
        %v445 = vadd.f32 %v435, %v443
        %447 = vrot.lane.b32.xlu0 %v374, 1
        %v448 = vpop.permute.xlu0 %447
        %v450 = vsel %vm406, 0.0, %v448
        %v451 = vmul.f32 %v374, 2.0
        %v452 = vadd.f32 %v450, %v451
        %453 = vrot.lane.b32.xlu0 %v374, 127
        %v454 = vpop.permute.xlu0 %453
        %v456 = vsel %vm417, %v454, 0.0
        %v457 = vadd.f32 %v452, %v456
        %v458 = vrot.slane %v374, 2
        %459 = vrot.lane.b32.xlu0 %v458, 1
        %v460 = vpop.permute.xlu0 %459
        %v462 = vsel %vm406, 0.0, %v460
        %v464 = vrot.slane %v451, 2
        %v466 = vadd.f32 %v462, %v464
        %v468 = vrot.slane %v456, 2
        %v470 = vadd.f32 %v466, %v468
        %vm473 = vcmask 1041408
        %v474 = vrot.slane %v444, 6
        %v475 = vrot.slane %v445, 6
        %v476 = vsel %vm473, %v474, %v475
        %v480 = vsel %vm473, %v457, %v474
        %v482 = vrot.slane %v457, 1
        %v484 = vrot.slane %v444, 7
        %v485 = vrot.slane %v445, 7
        %v486 = vsel %vm377, %v484, %v485
        %v491 = vrot.slane %v470, 7
        %v493 = vsel %vm377, %v482, %v484
        %v494 = vsel %vm377, %v485, %v491
        %v495 = vmul.f32 %v493, 2.0
        %v496 = vmul.f32 %v486, 2.0
        %v497 = vmul.f32 %v494, 2.0
        %v498 = vadd.f32 %v480, %v495
        %v499 = vadd.f32 %v476, %v496
        %v500 = vadd.f32 %v475, %v497
        %v501 = vadd.f32 %v498, %v444
        %v502 = vadd.f32 %v499, %v445
        %v503 = vadd.f32 %v500, %v470
        %v504 = vmul.f32 %v501, %v366
        %v505 = vmul.f32 %v502, %v367
        %v506 = vmul.f32 %v503, %v368
        %v507 = vmul.f32 %v504, 4.0
        %v508 = vmul.f32 %v505, 4.0
        %v509 = vmul.f32 %v506, 4.0
        %v512 = vrot.slane %v504, 7
        %v513 = vrot.slane %v505, 7
        %v514 = vsel %vm377, %v512, %v513
        %v518 = vsub.f32 %v507, %v512
        %v519 = vsub.f32 %v508, %v514
        %v520 = vsub.f32 %v509, %v513
        %v522 = vrot.slane %v504, 1
        %v523 = vrot.slane %v505, 1
        %v524 = vsel %vm384, %v522, %v523
        %v525 = vrot.slane %v506, 1
        %v526 = vsel %vm384, %v523, %v525
        %v530 = vsub.f32 %v518, %v524
        %v531 = vsub.f32 %v519, %v526
        %v532 = vsub.f32 %v520, %v525
        %533 = vrot.lane.b32.xlu0 %v524, 1
        %v534 = vpop.permute.xlu0 %533
        %535 = vrot.lane.b32.xlu0 %v526, 1
        %v536 = vpop.permute.xlu0 %535
        %v539 = vsel %vm406, 0.0, %v534
        %v540 = vsel %vm406, 0.0, %v536
        %v543 = vrot.slane %v539, 7
        %v544 = vrot.slane %v540, 7
        %v545 = vsel %vm377, %v543, %v544
        %v549 = vsub.f32 %v530, %v543
        %v550 = vsub.f32 %v531, %v545
        %v551 = vsub.f32 %v532, %v544
        %552 = vrot.lane.b32.xlu0 %v504, 127
        %v553 = vpop.permute.xlu0 %552
        %554 = vrot.lane.b32.xlu0 %v505, 127
        %v555 = vpop.permute.xlu0 %554
        %556 = vrot.lane.b32.xlu0 %v506, 127
        %v557 = vpop.permute.xlu0 %556
        %v561 = vsel %vm417, %v553, 0.0
        %v562 = vsel %vm417, %v555, 0.0
        %v563 = vsel %vm417, %v557, 0.0
        %v564 = vsub.f32 %v549, %v561
        %v565 = vsub.f32 %v550, %v562
        %v566 = vsub.f32 %v551, %v563
        %v570 = vrot.slane %v564, 1
        %v571 = vrot.slane %v565, 1
        %v572 = vsel %vm384, %v570, %v571
        %v573 = vrot.slane %v566, 1
        %v574 = vsel %vm384, %v571, %v573
        %v577 = vsub.f32 %v420, %v572
        %v578 = vsub.f32 %v421, %v574
        %v579 = vmul.f32 %v577, %v577
        %v580 = vmul.f32 %v578, %v578
        %s581 = scalar_lea.vmem %s264, 16 [#allocation3]
        %v582 = vld [vmem:[%s581] sm:$0xff]
        %v583 = vld [vmem:[%s581 + $0x8] sm:$0xff]
        %s584 = scalar_lea.vmem %s326, 2
        %v585 = vld [vmem:[%s584] sm:$0x3]
        %s586 = scalar_lea.vmem %s273, 16 [#allocation5]
        %v587 = vld [vmem:[%s586] sm:$0xff]
        %v588 = vld [vmem:[%s586 + $0x8] sm:$0xff]
        %s589 = scalar_lea.vmem %s335, 4
        %v590 = vld [vmem:[%s589] sm:$0xf]
        %v593 = vrot.slane %v582, 7
        %v594 = vrot.slane %v583, 7
        %v595 = vsel %vm377, %v593, %v594
        %v598 = vsel %vm377, %v585, %v593
        %v599 = vrot.slane %v582, 1
        %v600 = vrot.slane %v583, 1
        %v601 = vsel %vm384, %v599, %v600
        %v605 = vrot.slane %v585, 2
        %v607 = vsel %vm384, %v600, %v605
        %v608 = vmul.f32 %v582, 4.0
        %v609 = vmul.f32 %v583, 4.0
        %v610 = vsub.f32 %v608, %v598
        %v611 = vsub.f32 %v609, %v595
        %v612 = vsub.f32 %v610, %v601
        %v613 = vsub.f32 %v611, %v607
        %614 = vrot.lane.b32.xlu0 %v582, 1
        %v615 = vpop.permute.xlu0 %614
        %616 = vrot.lane.b32.xlu0 %v583, 1
        %v617 = vpop.permute.xlu0 %616
        %v620 = vsel %vm406, 0.0, %v615
        %v621 = vsel %vm406, 0.0, %v617
        %v622 = vsub.f32 %v612, %v620
        %v623 = vsub.f32 %v613, %v621
        %624 = vrot.lane.b32.xlu0 %v582, 127
        %v625 = vpop.permute.xlu0 %624
        %626 = vrot.lane.b32.xlu0 %v583, 127
        %v627 = vpop.permute.xlu0 %626
        %v630 = vsel %vm417, %v625, 0.0
        %v631 = vsel %vm417, %v627, 0.0
        %v632 = vsub.f32 %v622, %v630
        %v633 = vsub.f32 %v623, %v631
        %636 = vrot.lane.b32.xlu0 %v587, 1
        %v637 = vpop.permute.xlu0 %636
        %638 = vrot.lane.b32.xlu0 %v588, 1
        %v639 = vpop.permute.xlu0 %638
        %v642 = vsel %vm406, 0.0, %v637
        %v643 = vsel %vm406, 0.0, %v639
        %v644 = vmul.f32 %v587, 2.0
        %v645 = vmul.f32 %v588, 2.0
        %v646 = vadd.f32 %v642, %v644
        %v647 = vadd.f32 %v643, %v645
        %648 = vrot.lane.b32.xlu0 %v587, 127
        %v649 = vpop.permute.xlu0 %648
        %650 = vrot.lane.b32.xlu0 %v588, 127
        %v651 = vpop.permute.xlu0 %650
        %v654 = vsel %vm417, %v649, 0.0
        %v655 = vsel %vm417, %v651, 0.0
        %v656 = vadd.f32 %v646, %v654
        %v657 = vadd.f32 %v647, %v655
        %659 = vrot.lane.b32.xlu0 %v590, 1
        %v660 = vpop.permute.xlu0 %659
        %v662 = vsel %vm406, 0.0, %v660
        %v663 = vmul.f32 %v590, 2.0
        %v664 = vadd.f32 %v662, %v663
        %665 = vrot.lane.b32.xlu0 %v590, 127
        %v666 = vpop.permute.xlu0 %665
        %v668 = vsel %vm417, %v666, 0.0
        %v669 = vadd.f32 %v664, %v668
        %v670 = vrot.slane %v590, 2
        %671 = vrot.lane.b32.xlu0 %v670, 1
        %v672 = vpop.permute.xlu0 %671
        %v674 = vsel %vm406, 0.0, %v672
        %v676 = vrot.slane %v663, 2
        %v678 = vadd.f32 %v674, %v676
        %v680 = vrot.slane %v668, 2
        %v682 = vadd.f32 %v678, %v680
        %v685 = vrot.slane %v656, 6
        %v686 = vrot.slane %v657, 6
        %v687 = vsel %vm473, %v685, %v686
        %v691 = vsel %vm473, %v669, %v685
        %v693 = vrot.slane %v669, 1
        %v695 = vrot.slane %v656, 7
        %v696 = vrot.slane %v657, 7
        %v697 = vsel %vm377, %v695, %v696
        %v702 = vrot.slane %v682, 7
        %v704 = vsel %vm377, %v693, %v695
        %v705 = vsel %vm377, %v696, %v702
        %v706 = vmul.f32 %v704, 2.0
        %v707 = vmul.f32 %v697, 2.0
        %v708 = vmul.f32 %v705, 2.0
        %v709 = vadd.f32 %v691, %v706
        %v710 = vadd.f32 %v687, %v707
        %v711 = vadd.f32 %v686, %v708
        %v712 = vadd.f32 %v709, %v656
        %v713 = vadd.f32 %v710, %v657
        %v714 = vadd.f32 %v711, %v682
        %v715 = vmul.f32 %v712, %v366
        %v716 = vmul.f32 %v713, %v367
        %v717 = vmul.f32 %v714, %v368
        %v718 = vmul.f32 %v715, 4.0
        %v719 = vmul.f32 %v716, 4.0
        %v720 = vmul.f32 %v717, 4.0
        %v723 = vrot.slane %v715, 7
        %v724 = vrot.slane %v716, 7
        %v725 = vsel %vm377, %v723, %v724
        %v729 = vsub.f32 %v718, %v723
        %v730 = vsub.f32 %v719, %v725
        %v731 = vsub.f32 %v720, %v724
        %v733 = vrot.slane %v715, 1
        %v734 = vrot.slane %v716, 1
        %v735 = vsel %vm384, %v733, %v734
        %v736 = vrot.slane %v717, 1
        %v737 = vsel %vm384, %v734, %v736
        %v741 = vsub.f32 %v729, %v735
        %v742 = vsub.f32 %v730, %v737
        %v743 = vsub.f32 %v731, %v736
        %744 = vrot.lane.b32.xlu0 %v735, 1
        %v745 = vpop.permute.xlu0 %744
        %746 = vrot.lane.b32.xlu0 %v737, 1
        %v747 = vpop.permute.xlu0 %746
        %v750 = vsel %vm406, 0.0, %v745
        %v751 = vsel %vm406, 0.0, %v747
        %v754 = vrot.slane %v750, 7
        %v755 = vrot.slane %v751, 7
        %v756 = vsel %vm377, %v754, %v755
        %v760 = vsub.f32 %v741, %v754
        %v761 = vsub.f32 %v742, %v756
        %v762 = vsub.f32 %v743, %v755
        %763 = vrot.lane.b32.xlu0 %v715, 127
        %v764 = vpop.permute.xlu0 %763
        %765 = vrot.lane.b32.xlu0 %v716, 127
        %v766 = vpop.permute.xlu0 %765
        %767 = vrot.lane.b32.xlu0 %v717, 127
        %v768 = vpop.permute.xlu0 %767
        %v772 = vsel %vm417, %v764, 0.0
        %v773 = vsel %vm417, %v766, 0.0
        %v774 = vsel %vm417, %v768, 0.0
        %v775 = vsub.f32 %v760, %v772
        %v776 = vsub.f32 %v761, %v773
        %v777 = vsub.f32 %v762, %v774
        %v781 = vrot.slane %v775, 1
        %v782 = vrot.slane %v776, 1
        %v783 = vsel %vm384, %v781, %v782
        %v784 = vrot.slane %v777, 1
        %v785 = vsel %vm384, %v782, %v784
        %v788 = vsub.f32 %v632, %v783
        %v789 = vsub.f32 %v633, %v785
        %v790 = vmul.f32 %v788, %v788
        %v791 = vmul.f32 %v789, %v789
        %v792 = vadd.f32 %v579, %v790
        %v793 = vadd.f32 %v580, %v791
        %s794 = scalar_lea.vmem %s264, 32 [#allocation3]
        %v795 = vld [vmem:[%s794] sm:$0xff]
        %v796 = vld [vmem:[%s794 + $0x8] sm:$0xff]
        %s797 = scalar_lea.vmem %s326, 4
        %v798 = vld [vmem:[%s797] sm:$0x3]
        %s799 = scalar_lea.vmem %s273, 32 [#allocation5]
        %v800 = vld [vmem:[%s799] sm:$0xff]
        %v801 = vld [vmem:[%s799 + $0x8] sm:$0xff]
        %s802 = scalar_lea.vmem %s335, 8
        %v803 = vld [vmem:[%s802] sm:$0xf]
        %v806 = vrot.slane %v795, 7
        %v807 = vrot.slane %v796, 7
        %v808 = vsel %vm377, %v806, %v807
        %v811 = vsel %vm377, %v798, %v806
        %v812 = vrot.slane %v795, 1
        %v813 = vrot.slane %v796, 1
        %v814 = vsel %vm384, %v812, %v813
        %v818 = vrot.slane %v798, 2
        %v820 = vsel %vm384, %v813, %v818
        %v821 = vmul.f32 %v795, 4.0
        %v822 = vmul.f32 %v796, 4.0
        %v823 = vsub.f32 %v821, %v811
        %v824 = vsub.f32 %v822, %v808
        %v825 = vsub.f32 %v823, %v814
        %v826 = vsub.f32 %v824, %v820
        %827 = vrot.lane.b32.xlu0 %v795, 1
        %v828 = vpop.permute.xlu0 %827
        %829 = vrot.lane.b32.xlu0 %v796, 1
        %v830 = vpop.permute.xlu0 %829
        %v833 = vsel %vm406, 0.0, %v828
        %v834 = vsel %vm406, 0.0, %v830
        %v835 = vsub.f32 %v825, %v833
        %v836 = vsub.f32 %v826, %v834
        %837 = vrot.lane.b32.xlu0 %v795, 127
        %v838 = vpop.permute.xlu0 %837
        %839 = vrot.lane.b32.xlu0 %v796, 127
        %v840 = vpop.permute.xlu0 %839
        %v843 = vsel %vm417, %v838, 0.0
        %v844 = vsel %vm417, %v840, 0.0
        %v845 = vsub.f32 %v835, %v843
        %v846 = vsub.f32 %v836, %v844
        %849 = vrot.lane.b32.xlu0 %v800, 1
        %v850 = vpop.permute.xlu0 %849
        %851 = vrot.lane.b32.xlu0 %v801, 1
        %v852 = vpop.permute.xlu0 %851
        %v855 = vsel %vm406, 0.0, %v850
        %v856 = vsel %vm406, 0.0, %v852
        %v857 = vmul.f32 %v800, 2.0
        %v858 = vmul.f32 %v801, 2.0
        %v859 = vadd.f32 %v855, %v857
        %v860 = vadd.f32 %v856, %v858
        %861 = vrot.lane.b32.xlu0 %v800, 127
        %v862 = vpop.permute.xlu0 %861
        %863 = vrot.lane.b32.xlu0 %v801, 127
        %v864 = vpop.permute.xlu0 %863
        %v867 = vsel %vm417, %v862, 0.0
        %v868 = vsel %vm417, %v864, 0.0
        %v869 = vadd.f32 %v859, %v867
        %v870 = vadd.f32 %v860, %v868
        %872 = vrot.lane.b32.xlu0 %v803, 1
        %v873 = vpop.permute.xlu0 %872
        %v875 = vsel %vm406, 0.0, %v873
        %v876 = vmul.f32 %v803, 2.0
        %v877 = vadd.f32 %v875, %v876
        %878 = vrot.lane.b32.xlu0 %v803, 127
        %v879 = vpop.permute.xlu0 %878
        %v881 = vsel %vm417, %v879, 0.0
        %v882 = vadd.f32 %v877, %v881
        %v883 = vrot.slane %v803, 2
        %884 = vrot.lane.b32.xlu0 %v883, 1
        %v885 = vpop.permute.xlu0 %884
        %v887 = vsel %vm406, 0.0, %v885
        %v889 = vrot.slane %v876, 2
        %v891 = vadd.f32 %v887, %v889
        %v893 = vrot.slane %v881, 2
        %v895 = vadd.f32 %v891, %v893
        %v898 = vrot.slane %v869, 6
        %v899 = vrot.slane %v870, 6
        %v900 = vsel %vm473, %v898, %v899
        %v904 = vsel %vm473, %v882, %v898
        %v906 = vrot.slane %v882, 1
        %v908 = vrot.slane %v869, 7
        %v909 = vrot.slane %v870, 7
        %v910 = vsel %vm377, %v908, %v909
        %v915 = vrot.slane %v895, 7
        %v917 = vsel %vm377, %v906, %v908
        %v918 = vsel %vm377, %v909, %v915
        %v919 = vmul.f32 %v917, 2.0
        %v920 = vmul.f32 %v910, 2.0
        %v921 = vmul.f32 %v918, 2.0
        %v922 = vadd.f32 %v904, %v919
        %v923 = vadd.f32 %v900, %v920
        %v924 = vadd.f32 %v899, %v921
        %v925 = vadd.f32 %v922, %v869
        %v926 = vadd.f32 %v923, %v870
        %v927 = vadd.f32 %v924, %v895
        %v928 = vmul.f32 %v925, %v366
        %v929 = vmul.f32 %v926, %v367
        %v930 = vmul.f32 %v927, %v368
        %v931 = vmul.f32 %v928, 4.0
        %v932 = vmul.f32 %v929, 4.0
        %v933 = vmul.f32 %v930, 4.0
        %v936 = vrot.slane %v928, 7
        %v937 = vrot.slane %v929, 7
        %v938 = vsel %vm377, %v936, %v937
        %v942 = vsub.f32 %v931, %v936
        %v943 = vsub.f32 %v932, %v938
        %v944 = vsub.f32 %v933, %v937
        %v946 = vrot.slane %v928, 1
        %v947 = vrot.slane %v929, 1
        %v948 = vsel %vm384, %v946, %v947
        %v949 = vrot.slane %v930, 1
        %v950 = vsel %vm384, %v947, %v949
        %v954 = vsub.f32 %v942, %v948
        %v955 = vsub.f32 %v943, %v950
        %v956 = vsub.f32 %v944, %v949
        %957 = vrot.lane.b32.xlu0 %v948, 1
        %v958 = vpop.permute.xlu0 %957
        %959 = vrot.lane.b32.xlu0 %v950, 1
        %v960 = vpop.permute.xlu0 %959
        %v963 = vsel %vm406, 0.0, %v958
        %v964 = vsel %vm406, 0.0, %v960
        %v967 = vrot.slane %v963, 7
        %v968 = vrot.slane %v964, 7
        %v969 = vsel %vm377, %v967, %v968
        %v973 = vsub.f32 %v954, %v967
        %v974 = vsub.f32 %v955, %v969
        %v975 = vsub.f32 %v956, %v968
        %976 = vrot.lane.b32.xlu0 %v928, 127
        %v977 = vpop.permute.xlu0 %976
        %978 = vrot.lane.b32.xlu0 %v929, 127
        %v979 = vpop.permute.xlu0 %978
        %980 = vrot.lane.b32.xlu0 %v930, 127
        %v981 = vpop.permute.xlu0 %980
        %v985 = vsel %vm417, %v977, 0.0
        %v986 = vsel %vm417, %v979, 0.0
        %v987 = vsel %vm417, %v981, 0.0
        %v988 = vsub.f32 %v973, %v985
        %v989 = vsub.f32 %v974, %v986
        %v990 = vsub.f32 %v975, %v987
        %v994 = vrot.slane %v988, 1
        %v995 = vrot.slane %v989, 1
        %v996 = vsel %vm384, %v994, %v995
        %v997 = vrot.slane %v990, 1
        %v998 = vsel %vm384, %v995, %v997
        %v1001 = vsub.f32 %v845, %v996
        %v1002 = vsub.f32 %v846, %v998
        %v1003 = vmul.f32 %v1001, %v1001
        %v1004 = vmul.f32 %v1002, %v1002
        %v1005 = vadd.f32 %v792, %v1003
        %v1006 = vadd.f32 %v793, %v1004
        %v1007 = vld [vmem:[#allocation2] sm:$0xff]
        %v1008 = vld [vmem:[#allocation2 + $0x8] sm:$0xff]
        %v1009 = vadd.f32 %v1007, %v1005
        %v1010 = vadd.f32 %v1008, %v1006
        %vm1011 = vcmask 130048
        %1012 = vst.msk [vmem:[#allocation2] sm:$0xff] %vm1011, %v1009
        %1013 = vst.msk [vmem:[#allocation2 + $0x8] sm:$0xff] %vm1011, %v1010
        // Predicated region
        $region49: #{gauss_loss.1} parent=35 // pred_check
          %p1014 = pneg %p340
        $region50: #{gauss_loss.1} parent=35 // pred_check_branch
          %1016 = sbr.rel (%p1014) target = $region52
        $region51: #{gauss_loss.1} parent=35 // pred_region
          %v1017 = vld [vmem:[#allocation2] sm:$0xff]
          %v1018 = vld [vmem:[#allocation2 + $0x8] sm:$0xff]
          %v1019 = vsel %vm1011, %v1017, 0.0
          %v1020 = vsel %vm1011, %v1018, 0.0
          %v1021 = vadd.f32 %v1019, %v1020
          %1022 = vadd.xlane.f32.xlu0 %v1021
          %v1023 = vpop.xlane.xlu0 %1022
          %v1024 = vrot.slane %v1023, 4
          %v1025 = vadd.f32 %v1023, %v1024
          %v1026 = vrot.slane %v1025, 2
          %v1027 = vadd.f32 %v1025, %v1026
          %v1028 = vrot.slane %v1027, 1
          %v1029 = vadd.f32 %v1027, %v1028
          %s1030 = vtos %v1029
          %v1031 = vstv %s1030
          %1032 = vst [vmem:[%s339] sm:$0xff] %v1031
        $region52: #{gauss_loss.1} parent=35 // pred_fallthru
          _
        %p1033 = scmp.lt.s32.totalorder %s25, 1
        %s1034 = scalar_select %p1033, %s25, 1
        %s1035 = smul.addr %s1034, 8
        %s1036 = scalar_lea.vmem %s4, %s1035
        // Predicated region
        $region53: #{gauss_loss.1} parent=35 // pred_check
          %p1037 = pneg %p163
        $region54: #{gauss_loss.1} parent=35 // pred_check_branch
          %1039 = sbr.rel (%p1037) target = $region56
        $region55: #{gauss_loss.1} parent=35 // pred_region
          _
        $region56: #{gauss_loss.1} parent=35 // pred_fallthru
          _
      $region36: #{gauss_loss.1} parent=5 // pred_fallthru
        _
      %p1040 = scmp.le.s32.totalorder 2, %s16
      // Predicated region
      $region57: #{gauss_loss.1} parent=5 // pred_check
        %p1041 = pneg %p1040
      $region58: #{gauss_loss.1} parent=5 // pred_check_branch
        %1043 = sbr.rel (%p1041) target = $region60
      $region59: #{gauss_loss.1} parent=5 // pred_region
        %s1044 = ssub.s32 %s16, 2
        // Predicated region
        $region61: #{gauss_loss.1} parent=59 // pred_check
          %p1045 = pneg %p169
        $region62: #{gauss_loss.1} parent=59 // pred_check_branch
          %1047 = sbr.rel (%p1045) target = $region64
        $region63: #{gauss_loss.1} parent=59 // pred_region
          %p1048 = scmp.lt.s32.totalorder %s27, 1
          %s1049 = scalar_select %p1048, %s27, 1
          %s1050 = smul.addr %s1049, 8
          %s1051 = scalar_lea.vmem %s4, %s1050
        $region64: #{gauss_loss.1} parent=59 // pred_fallthru
          _
      $region60: #{gauss_loss.1} parent=5 // pred_fallthru
        _
    $region6: #{gauss_loss.1} parent=1 // loop_footer
      %s20 = sadd.s32 1, %s16
    $region7: #{gauss_loss.1} parent=1 // loop_footer_branch
      %15 = sbr.rel target = $region3
    $region8: #{gauss_loss.1} parent=1 // loop_exit
      _
    %1052 = vsyncpa [#allocation4], 1
    %s1053 = scalar_lea.sflag [#allocation4], 1
    %1054 = vsyncpa %s1053, 1
    %1055 = vsyncpa [#allocation6], 1
    %s1056 = scalar_lea.sflag [#allocation6], 1
    %1057 = vsyncpa %s1056, 1

</llo_original>
